<compile_context>
chip_gen: v7x
topology: tpu7x:2x2x1
jax: 0.10.0
libtpu: 0.0.40
codegen_flags: <defaults>
</compile_context>

<pallas_src>
import functools

import jax
import jax.numpy as jnp
from jax.experimental import pallas as pl
from jax.experimental.pallas import tpu as pltpu


_VMEM_LIMIT = 32 * 1024 * 1024  # fits v7x's 64 MiB physical VMEM with headroom


def _round_up(x, m):
    return (x + m - 1) // m * m


# ----------------------------------------------------------------------------
# Fused linear kernel:  out = relu?( x @ W + b )      (bf16 MXU, f32 epilogue)
# ----------------------------------------------------------------------------
def _linear_kernel(x_ref, w_ref, b_ref, o_ref, *, relu):
    acc = jnp.dot(x_ref[...].astype(jnp.bfloat16), w_ref[...],
                  preferred_element_type=jnp.float32)
    acc = acc + b_ref[...]
    if relu:
        acc = jnp.maximum(acc, 0.0)
    o_ref[...] = acc


def linear(x2d, w_kn_bf16, b_row_f32, *, relu=False, tm=256):
    """x2d: (M, K) f32, w: (K, N) bf16, b: (1, N) f32 -> (M, N) f32."""
    m, k = x2d.shape
    n = w_kn_bf16.shape[1]
    tm_eff = min(tm, _round_up(m, 8))
    mp = _round_up(m, tm_eff)
    xp = jnp.pad(x2d, ((0, mp - m), (0, 0))) if mp != m else x2d

    out = pl.pallas_call(
        functools.partial(_linear_kernel, relu=relu),
        grid=(mp // tm_eff,),
        in_specs=[
            pl.BlockSpec((tm_eff, k), lambda i: (i, 0)),
            pl.BlockSpec((k, n), lambda i: (0, 0)),   # weights resident
            pl.BlockSpec((1, n), lambda i: (0, 0)),   # bias resident
        ],
        out_specs=pl.BlockSpec((tm_eff, n), lambda i: (i, 0)),
        out_shape=jax.ShapeDtypeStruct((mp, n), jnp.float32),
        compiler_params=pltpu.CompilerParams(
            dimension_semantics=("parallel",),
            vmem_limit_bytes=_VMEM_LIMIT),
        cost_estimate=pl.CostEstimate(
            flops=2 * mp * k * n,
            transcendentals=0,
            bytes_accessed=4 * mp * k + 2 * k * n + 4 * n + 4 * mp * n),
    )(xp, w_kn_bf16, b_row_f32)
    return out[:m] if mp != m else out


# ----------------------------------------------------------------------------
# Bidirectional LSTM recurrence kernel (one layer), grid over time steps.
# gates_x = x @ [W_ih_f | W_ih_b]^T + biases is precomputed time-major
# (T, B, 8H); forward uses columns [0,4H), backward [4H,8H).  Forward reads
# the gate block at t, backward at T-1-t, so one serial pass handles both
# directions.  h/c for both directions live in persistent VMEM scratch.
# ----------------------------------------------------------------------------
def _bilstm_step_kernel(gx_f_ref, gx_b_ref, whh_f_ref, whh_b_ref,
                        out_f_ref, out_b_ref,
                        hf_ref, cf_ref, hb_ref, cb_ref, *, hidden):
    @pl.when(pl.program_id(0) == 0)
    def _():
        hf_ref[...] = jnp.zeros_like(hf_ref)
        cf_ref[...] = jnp.zeros_like(cf_ref)
        hb_ref[...] = jnp.zeros_like(hb_ref)
        cb_ref[...] = jnp.zeros_like(cb_ref)

    h4 = 4 * hidden

    def cell(gx, h_prev, c_prev, whh_t):
        # gates: (B, 4H) = precomputed input part + h_{t-1} @ W_hh^T
        gates = gx + jnp.dot(h_prev.astype(jnp.bfloat16), whh_t,
                             preferred_element_type=jnp.float32)
        i = jax.nn.sigmoid(gates[:, 0 * hidden:1 * hidden])
        f = jax.nn.sigmoid(gates[:, 1 * hidden:2 * hidden])
        g = jnp.tanh(gates[:, 2 * hidden:3 * hidden])
        o = jax.nn.sigmoid(gates[:, 3 * hidden:4 * hidden])
        c = f * c_prev + i * g
        h = o * jnp.tanh(c)
        return h, c

    hf, cf = cell(gx_f_ref[:, 0:h4], hf_ref[...], cf_ref[...], whh_f_ref[...])
    hb, cb = cell(gx_b_ref[:, h4:2 * h4], hb_ref[...], cb_ref[...],
                  whh_b_ref[...])

    hf_ref[...] = hf
    cf_ref[...] = cf
    hb_ref[...] = hb
    cb_ref[...] = cb
    out_f_ref[...] = hf
    out_b_ref[...] = hb


def bilstm_layer(gates_tm, w_hh_f_t, w_hh_b_t, hidden):
    """gates_tm: (T, B, 8H) f32, w_hh_*_t: (H, 4H) bf16 -> 2x (T, B, H) f32."""
    t_len, b, g8 = gates_tm.shape
    fwd_map = lambda t: (t, 0, 0)
    bwd_map = lambda t: (t_len - 1 - t, 0, 0)

    out_f, out_b = pl.pallas_call(
        functools.partial(_bilstm_step_kernel, hidden=hidden),
        grid=(t_len,),
        in_specs=[
            pl.BlockSpec((None, b, g8), fwd_map),            # fwd gate slice
            pl.BlockSpec((None, b, g8), bwd_map),            # bwd gate slice
            pl.BlockSpec((hidden, 4 * hidden), lambda t: (0, 0)),  # W_hh fwd
            pl.BlockSpec((hidden, 4 * hidden), lambda t: (0, 0)),  # W_hh bwd
        ],
        out_specs=[
            pl.BlockSpec((None, b, hidden), fwd_map),
            pl.BlockSpec((None, b, hidden), bwd_map),
        ],
        out_shape=[
            jax.ShapeDtypeStruct((t_len, b, hidden), jnp.float32),
            jax.ShapeDtypeStruct((t_len, b, hidden), jnp.float32),
        ],
        scratch_shapes=[
            pltpu.VMEM((b, hidden), jnp.float32),  # h fwd
            pltpu.VMEM((b, hidden), jnp.float32),  # c fwd
            pltpu.VMEM((b, hidden), jnp.float32),  # h bwd
            pltpu.VMEM((b, hidden), jnp.float32),  # c bwd
        ],
        compiler_params=pltpu.CompilerParams(
            dimension_semantics=("arbitrary",),   # sequential recurrence
            vmem_limit_bytes=_VMEM_LIMIT),
    )(gates_tm, gates_tm, w_hh_f_t, w_hh_b_t)
    return out_f, out_b


# ----------------------------------------------------------------------------
# Attention kernel: scores = x @ w + b; softmax over T; context = sum_t w_t x_t
# One grid step per batch element.
# ----------------------------------------------------------------------------
def _attention_kernel(x_ref, w_ref, b_ref, ctx_ref):
    x = x_ref[...]                                            # (T, 2H) f32
    scores = jnp.sum(x * w_ref[...], axis=-1, keepdims=True)  # (T, 1)
    scores = scores + b_ref[...]
    m = jnp.max(scores, axis=0, keepdims=True)
    e = jnp.exp(scores - m)
    wts = e * pl.reciprocal(jnp.sum(e, axis=0, keepdims=True), approx=False)
    ctx_ref[...] = jnp.sum(x * wts, axis=0, keepdims=True)    # (1, 2H)


def attention(lstm_out_btd, w_att_row, b_att_11):
    b, t, d = lstm_out_btd.shape
    ctx = pl.pallas_call(
        _attention_kernel,
        grid=(b,),
        in_specs=[
            pl.BlockSpec((None, t, d), lambda i: (i, 0, 0)),
            pl.BlockSpec((1, d), lambda i: (0, 0)),
            pl.BlockSpec((1, 1), lambda i: (0, 0)),
        ],
        out_specs=pl.BlockSpec((None, 1, d), lambda i: (i, 0, 0)),
        out_shape=jax.ShapeDtypeStruct((b, 1, d), jnp.float32),
        compiler_params=pltpu.CompilerParams(
            dimension_semantics=("parallel",),
            vmem_limit_bytes=_VMEM_LIMIT),
    )(lstm_out_btd, w_att_row, b_att_11)
    return ctx.reshape(b, d)


# ----------------------------------------------------------------------------
# Fused classifier head: out = relu(x @ W1 + b1) @ W2 + b2   (one kernel)
# ----------------------------------------------------------------------------
def _mlp_head_kernel(x_ref, w1_ref, b1_ref, w2_ref, b2_ref, o_ref):
    h = jnp.dot(x_ref[...].astype(jnp.bfloat16), w1_ref[...],
                preferred_element_type=jnp.float32) + b1_ref[...]
    h = jnp.maximum(h, 0.0)
    o_ref[...] = jnp.dot(h.astype(jnp.bfloat16), w2_ref[...],
                         preferred_element_type=jnp.float32) + b2_ref[...]


def mlp_head(x2d, w1, b1, w2, b2):
    m, k = x2d.shape
    n1 = w1.shape[1]
    n2 = w2.shape[1]
    mp = _round_up(m, 8)
    xp = jnp.pad(x2d, ((0, mp - m), (0, 0))) if mp != m else x2d

    out = pl.pallas_call(
        _mlp_head_kernel,
        grid=(1,),
        in_specs=[
            pl.BlockSpec((mp, k), lambda i: (0, 0)),
            pl.BlockSpec((k, n1), lambda i: (0, 0)),
            pl.BlockSpec((1, n1), lambda i: (0, 0)),
            pl.BlockSpec((n1, n2), lambda i: (0, 0)),
            pl.BlockSpec((1, n2), lambda i: (0, 0)),
        ],
        out_specs=pl.BlockSpec((mp, n2), lambda i: (0, 0)),
        out_shape=jax.ShapeDtypeStruct((mp, n2), jnp.float32),
        compiler_params=pltpu.CompilerParams(
            dimension_semantics=("parallel",),
            vmem_limit_bytes=_VMEM_LIMIT),
    )(xp, w1, b1, w2, b2)
    return out[:m] if mp != m else out


# ----------------------------------------------------------------------------
# Parameters (PyTorch-style init, deterministic), matmul weights stored bf16.
# Gate order follows nn.LSTM: [i, f, g, o].
# ----------------------------------------------------------------------------
def _uniform(key, shape, bound):
    return jax.random.uniform(key, shape, jnp.float32, -bound, bound)


def init_params(key, input_size, hidden_size, num_layers):
    params = {"lstm": []}
    h = hidden_size
    bound = 1.0 / jnp.sqrt(h)
    for layer in range(num_layers):
        in_f = input_size if layer == 0 else 2 * h
        w_ih_t, biases, w_hh_t = [], [], []
        for _d in range(2):  # forward, reverse
            key, k1, k2, k3, k4 = jax.random.split(key, 5)
            w_ih = _uniform(k1, (4 * h, in_f), bound)   # (4H, in)
            w_hh = _uniform(k2, (4 * h, h), bound)      # (4H, H)
            b_ih = _uniform(k3, (4 * h,), bound)
            b_hh = _uniform(k4, (4 * h,), bound)
            w_ih_t.append(w_ih.T)                       # (in, 4H)
            biases.append((b_ih + b_hh).reshape(1, 4 * h))
            w_hh_t.append(w_hh.T.astype(jnp.bfloat16))  # (H, 4H)
        params["lstm"].append({
            # both directions' input projections fused along N: (in, 8H)
            "w_ih_cat": jnp.concatenate(w_ih_t, axis=1).astype(jnp.bfloat16),
            "b_cat": jnp.concatenate(biases, axis=1),   # (1, 8H) f32
            "w_hh_f_t": w_hh_t[0],                      # (H, 4H) bf16
            "w_hh_b_t": w_hh_t[1],                      # (H, 4H) bf16
        })

    # _AttentionModule: Linear(2H, 1)
    key, ka1, ka2 = jax.random.split(key, 3)
    ab = 1.0 / jnp.sqrt(2 * h)
    params["att_w"] = _uniform(ka1, (1, 2 * h), ab)            # f32 (VPU math)
    params["att_b"] = _uniform(ka2, (1, 1), ab)

    # classifier: Linear(2H, 256) -> ReLU -> Dropout -> Linear(256, 1)
    key, kc1, kc2, kc3, kc4 = jax.random.split(key, 5)
    b1 = 1.0 / jnp.sqrt(2 * h)
    b2 = 1.0 / jnp.sqrt(256)
    params["fc1_w"] = _uniform(kc1, (2 * h, 256), b1).astype(jnp.bfloat16)
    params["fc1_b"] = _uniform(kc2, (1, 256), b1)
    params["fc2_w"] = _uniform(kc3, (256, 1), b2).astype(jnp.bfloat16)
    params["fc2_b"] = _uniform(kc4, (1, 1), b2)
    return params


# ----------------------------------------------------------------------------
# Forward pass (== _LSTMClassifier.forward in eval mode)
# ----------------------------------------------------------------------------
def lstm_classifier_forward(x_btf, params, hidden_size):
    h = hidden_size

    # time-major activations throughout the LSTM stack: (T, B, feat)
    layer_in = jnp.transpose(x_btf, (1, 0, 2))
    for p in params["lstm"]:
        t_len, b_n, feat = layer_in.shape
        x2d = layer_in.reshape(t_len * b_n, feat)
        # one GEMM for both directions' input projections: (T*B, 8H)
        gates2d = linear(x2d, p["w_ih_cat"], p["b_cat"], relu=False)
        gates_tm = gates2d.reshape(t_len, b_n, 8 * h)
        out_f, out_b = bilstm_layer(gates_tm, p["w_hh_f_t"], p["w_hh_b_t"], h)
        layer_in = jnp.concatenate([out_f, out_b], axis=-1)   # (T, B, 2H)
        # TODO(synk): inter-layer LSTM dropout(0.45) applies only in training.

    lstm_out = jnp.transpose(layer_in, (1, 0, 2))              # (B, T, 2H)

    context = attention(lstm_out, params["att_w"], params["att_b"])  # (B, 2H)

    # TODO(synk): classifier Dropout(0.3) is identity in eval mode.
    out = mlp_head(context, params["fc1_w"], params["fc1_b"],
                   params["fc2_w"], params["fc2_b"])           # (B, 1)
    return out


# ----------------------------------------------------------------------------
if __name__ == "__main__":
    BATCH, SEQ, INPUT_SIZE, HIDDEN_SIZE, NUM_LAYERS = 2, 8, 16, 32, 2

    key = jax.random.PRNGKey(0)
    kx, kp = jax.random.split(key)
    x = jax.random.normal(kx, (BATCH, SEQ, INPUT_SIZE), jnp.float32)
    params = init_params(kp, INPUT_SIZE, HIDDEN_SIZE, NUM_LAYERS)

    fwd = jax.jit(functools.partial(lstm_classifier_forward,
                                    hidden_size=HIDDEN_SIZE))
    out = fwd(x, params)
    out = jax.block_until_ready(out)

    assert out.shape == (BATCH, 1), out.shape
    assert out.dtype == jnp.float32
    assert bool(jnp.all(jnp.isfinite(out)))
    print("KERNEL_OK")
</pallas_src>

<mosaic_0001>
module attributes {stable_mosaic.version = 11 : i64} {
  func.func @_linear_kernel(%arg0: i32, %arg1: memref<16x16xf32, #tpu.memory_space<vmem>>, %arg2: memref<16x256xbf16, #tpu.memory_space<vmem>>, %arg3: memref<1x256xf32, #tpu.memory_space<vmem>>, %arg4: memref<16x256xf32, #tpu.memory_space<vmem>>) attributes {dimension_semantics = [#tpu.dimension_semantics<parallel>], iteration_bounds = array<i64: 1>, scalar_prefetch = 0 : i64, scratch_operands = 0 : i64, tpu.core_type = #tpu.core_type<tc>, window_params = [{transform_indices = @transform_0, window_bounds = array<i64: 16, 16>}, {pipeline_mode = #tpu.pipeline_mode<synchronous>, transform_indices = @transform_1, window_bounds = array<i64: 16, 256>}, {pipeline_mode = #tpu.pipeline_mode<synchronous>, transform_indices = @transform_2, window_bounds = array<i64: 1, 256>}, {transform_indices = @transform_3, window_bounds = array<i64: 16, 256>}]} {
    %c0 = arith.constant 0 : index
    %c0_0 = arith.constant 0 : index
    %0 = vector.load %arg1[%c0, %c0_0] : memref<16x16xf32, #tpu.memory_space<vmem>>, vector<16x16xf32>
    %1 = arith.truncf %0 : vector<16x16xf32> to vector<16x16xbf16>
    %c0_1 = arith.constant 0 : index
    %c0_2 = arith.constant 0 : index
    %2 = vector.load %arg2[%c0_1, %c0_2] : memref<16x256xbf16, #tpu.memory_space<vmem>>, vector<16x256xbf16>
    %cst = arith.constant dense<0.000000e+00> : vector<16x256xf32>
    %3 = tpu.matmul %1, %2, %cst {dimension_numbers = #tpu.dot_dimension_numbers<[1], [0], [0], [1], [0, 0, 1, 1], [], []>} : vector<16x16xbf16>, vector<16x256xbf16>, vector<16x256xf32> -> vector<16x256xf32>
    %c0_3 = arith.constant 0 : index
    %c0_4 = arith.constant 0 : index
    %4 = vector.load %arg3[%c0_3, %c0_4] : memref<1x256xf32, #tpu.memory_space<vmem>>, vector<1x256xf32>
    %5 = vector.broadcast %4 : vector<1x256xf32> to vector<16x256xf32>
    %6 = arith.addf %3, %5 : vector<16x256xf32>
    %c0_5 = arith.constant 0 : index
    %c0_6 = arith.constant 0 : index
    %7 = vector.load %arg4[%c0_5, %c0_6] : memref<16x256xf32, #tpu.memory_space<vmem>>, vector<16x256xf32>
    tpu.vector_store %arg4[%c0_5, %c0_6], %6 {strides = array<i32>} : memref<16x256xf32, #tpu.memory_space<vmem>>, vector<16x256xf32>,
    return
  }
  func.func @transform_0(%arg0: i32) -> (i32, i32) {
    %c0_i32 = arith.constant 0 : i32
    %c0_i32_0 = arith.constant 0 : i32
    return %arg0, %c0_i32 : i32, i32
  }
  func.func @transform_1(%arg0: i32) -> (i32, i32) {
    %c0_i32 = arith.constant 0 : i32
    %c0_i32_0 = arith.constant 0 : i32
    %c0_i32_1 = arith.constant 0 : i32
    return %c0_i32, %c0_i32_0 : i32, i32
  }
  func.func @transform_2(%arg0: i32) -> (i32, i32) {
    %c0_i32 = arith.constant 0 : i32
    %c0_i32_0 = arith.constant 0 : i32
    %c0_i32_1 = arith.constant 0 : i32
    return %c0_i32, %c0_i32_0 : i32, i32
  }
  func.func @transform_3(%arg0: i32) -> (i32, i32) {
    %c0_i32 = arith.constant 0 : i32
    %c0_i32_0 = arith.constant 0 : i32
    return %arg0, %c0_i32 : i32, i32
  }
}

module attributes {stable_mosaic.version = 11 : i64} {
  func.func @_bilstm_step_kernel(%arg0: i32, %arg1: memref<1x2x256xf32, #tpu.memory_space<vmem>>, %arg2: memref<1x2x256xf32, #tpu.memory_space<vmem>>, %arg3: memref<32x128xbf16, #tpu.memory_space<vmem>>, %arg4: memref<32x128xbf16, #tpu.memory_space<vmem>>, %arg5: memref<1x2x32xf32, #tpu.memory_space<vmem>>, %arg6: memref<1x2x32xf32, #tpu.memory_space<vmem>>, %arg7: memref<2x32xf32, #tpu.memory_space<vmem>>, %arg8: memref<2x32xf32, #tpu.memory_space<vmem>>, %arg9: memref<2x32xf32, #tpu.memory_space<vmem>>, %arg10: memref<2x32xf32, #tpu.memory_space<vmem>>) attributes {dimension_semantics = [#tpu.dimension_semantics<arbitrary>], iteration_bounds = array<i64: 8>, scalar_prefetch = 0 : i64, scratch_operands = 4 : i64, tpu.core_type = #tpu.core_type<tc>, window_params = [{transform_indices = @transform_0, window_bounds = array<i64: 1, 2, 256>}, {transform_indices = @transform_1, window_bounds = array<i64: 1, 2, 256>}, {pipeline_mode = #tpu.pipeline_mode<synchronous>, transform_indices = @transform_2, window_bounds = array<i64: 32, 128>}, {pipeline_mode = #tpu.pipeline_mode<synchronous>, transform_indices = @transform_3, window_bounds = array<i64: 32, 128>}, {transform_indices = @transform_4, window_bounds = array<i64: 1, 2, 32>}, {transform_indices = @transform_5, window_bounds = array<i64: 1, 2, 32>}]} {
    %c0_i32 = arith.constant 0 : i32
    %0 = arith.cmpi eq, %arg0, %c0_i32 : i32
    %1 = arith.extui %0 : i1 to i32
    %c0_i32_0 = arith.constant 0 : i32
    %2 = arith.cmpi ne, %1, %c0_i32_0 : i32
    scf.if %2 {
      %cst_38 = arith.constant 0.000000e+00 : f32
      %79 = vector.broadcast %cst_38 : f32 to vector<2x32xf32>
      %c0_39 = arith.constant 0 : index
      %c0_40 = arith.constant 0 : index
      %80 = vector.load %arg7[%c0_39, %c0_40] : memref<2x32xf32, #tpu.memory_space<vmem>>, vector<2x32xf32>
      tpu.vector_store %arg7[%c0_39, %c0_40], %79 {strides = array<i32>} : memref<2x32xf32, #tpu.memory_space<vmem>>, vector<2x32xf32>,
      %cst_41 = arith.constant 0.000000e+00 : f32
      %81 = vector.broadcast %cst_41 : f32 to vector<2x32xf32>
      %c0_42 = arith.constant 0 : index
      %c0_43 = arith.constant 0 : index
      %82 = vector.load %arg8[%c0_42, %c0_43] : memref<2x32xf32, #tpu.memory_space<vmem>>, vector<2x32xf32>
      tpu.vector_store %arg8[%c0_42, %c0_43], %81 {strides = array<i32>} : memref<2x32xf32, #tpu.memory_space<vmem>>, vector<2x32xf32>,
      %cst_44 = arith.constant 0.000000e+00 : f32
      %83 = vector.broadcast %cst_44 : f32 to vector<2x32xf32>
      %c0_45 = arith.constant 0 : index
      %c0_46 = arith.constant 0 : index
      %84 = vector.load %arg9[%c0_45, %c0_46] : memref<2x32xf32, #tpu.memory_space<vmem>>, vector<2x32xf32>
      tpu.vector_store %arg9[%c0_45, %c0_46], %83 {strides = array<i32>} : memref<2x32xf32, #tpu.memory_space<vmem>>, vector<2x32xf32>,
      %cst_47 = arith.constant 0.000000e+00 : f32
      %85 = vector.broadcast %cst_47 : f32 to vector<2x32xf32>
      %c0_48 = arith.constant 0 : index
      %c0_49 = arith.constant 0 : index
      %86 = vector.load %arg10[%c0_48, %c0_49] : memref<2x32xf32, #tpu.memory_space<vmem>>, vector<2x32xf32>
      tpu.vector_store %arg10[%c0_48, %c0_49], %85 {strides = array<i32>} : memref<2x32xf32, #tpu.memory_space<vmem>>, vector<2x32xf32>,
    } else {
    }
    %c0 = arith.constant 0 : index
    %c0_1 = arith.constant 0 : index
    %c0_2 = arith.constant 0 : index
    %3 = vector.load %arg1[%c0, %c0_1, %c0_2] : memref<1x2x256xf32, #tpu.memory_space<vmem>>, vector<1x2x128xf32>
    %4 = vector.shape_cast %3 : vector<1x2x128xf32> to vector<2x128xf32>
    %c0_3 = arith.constant 0 : index
    %c0_4 = arith.constant 0 : index
    %5 = vector.load %arg7[%c0_3, %c0_4] : memref<2x32xf32, #tpu.memory_space<vmem>>, vector<2x32xf32>
    %c0_5 = arith.constant 0 : index
    %c0_6 = arith.constant 0 : index
    %6 = vector.load %arg8[%c0_5, %c0_6] : memref<2x32xf32, #tpu.memory_space<vmem>>, vector<2x32xf32>
    %c0_7 = arith.constant 0 : index
    %c0_8 = arith.constant 0 : index
    %7 = vector.load %arg3[%c0_7, %c0_8] : memref<32x128xbf16, #tpu.memory_space<vmem>>, vector<32x128xbf16>
    %8 = arith.truncf %5 : vector<2x32xf32> to vector<2x32xbf16>
    %cst = arith.constant dense<0.000000e+00> : vector<2x128xf32>
    %9 = tpu.matmul %8, %7, %cst {dimension_numbers = #tpu.dot_dimension_numbers<[1], [0], [0], [1], [0, 0, 1, 1], [], []>} : vector<2x32xbf16>, vector<32x128xbf16>, vector<2x128xf32> -> vector<2x128xf32>
    %10 = arith.addf %4, %9 : vector<2x128xf32>
    %11 = vector.extract_strided_slice %10 {offsets = [0, 0], sizes = [2, 32], strides = [1, 1]} : vector<2x128xf32> to vector<2x32xf32>
    %12 = arith.negf %11 : vector<2x32xf32>
    %13 = math.exp %12 : vector<2x32xf32>
    %cst_9 = arith.constant 1.000000e+00 : f32
    %14 = vector.broadcast %cst_9 : f32 to vector<2x32xf32>
    %15 = arith.addf %14, %13 : vector<2x32xf32>
    %16 = arith.divf %14, %15 : vector<2x32xf32>
    %17 = vector.extract_strided_slice %10 {offsets = [0, 32], sizes = [2, 32], strides = [1, 1]} : vector<2x128xf32> to vector<2x32xf32>
    %18 = arith.negf %17 : vector<2x32xf32>
    %19 = math.exp %18 : vector<2x32xf32>
    %cst_10 = arith.constant 1.000000e+00 : f32
    %20 = vector.broadcast %cst_10 : f32 to vector<2x32xf32>
    %21 = arith.addf %20, %19 : vector<2x32xf32>
    %22 = arith.divf %20, %21 : vector<2x32xf32>
    %23 = vector.extract_strided_slice %10 {offsets = [0, 64], sizes = [2, 32], strides = [1, 1]} : vector<2x128xf32> to vector<2x32xf32>
    %24 = math.tanh %23 : vector<2x32xf32>
    %25 = vector.extract_strided_slice %10 {offsets = [0, 96], sizes = [2, 32], strides = [1, 1]} : vector<2x128xf32> to vector<2x32xf32>
    %26 = arith.negf %25 : vector<2x32xf32>
    %27 = math.exp %26 : vector<2x32xf32>
    %cst_11 = arith.constant 1.000000e+00 : f32
    %28 = vector.broadcast %cst_11 : f32 to vector<2x32xf32>
    %29 = arith.addf %28, %27 : vector<2x32xf32>
    %30 = arith.divf %28, %29 : vector<2x32xf32>
    %31 = arith.mulf %22, %6 : vector<2x32xf32>
    %32 = arith.mulf %16, %24 : vector<2x32xf32>
    %33 = arith.addf %31, %32 : vector<2x32xf32>
    %34 = math.tanh %33 : vector<2x32xf32>
    %35 = arith.mulf %30, %34 : vector<2x32xf32>
    %c0_12 = arith.constant 0 : index
    %c0_13 = arith.constant 0 : index
    %c128 = arith.constant 128 : index
    %36 = vector.load %arg2[%c0_12, %c0_13, %c128] : memref<1x2x256xf32, #tpu.memory_space<vmem>>, vector<1x2x128xf32>
    %37 = vector.shape_cast %36 : vector<1x2x128xf32> to vector<2x128xf32>
    %c0_14 = arith.constant 0 : index
    %c0_15 = arith.constant 0 : index
    %38 = vector.load %arg9[%c0_14, %c0_15] : memref<2x32xf32, #tpu.memory_space<vmem>>, vector<2x32xf32>
    %c0_16 = arith.constant 0 : index
    %c0_17 = arith.constant 0 : index
    %39 = vector.load %arg10[%c0_16, %c0_17] : memref<2x32xf32, #tpu.memory_space<vmem>>, vector<2x32xf32>
    %c0_18 = arith.constant 0 : index
    %c0_19 = arith.constant 0 : index
    %40 = vector.load %arg4[%c0_18, %c0_19] : memref<32x128xbf16, #tpu.memory_space<vmem>>, vector<32x128xbf16>
    %41 = arith.truncf %38 : vector<2x32xf32> to vector<2x32xbf16>
    %cst_20 = arith.constant dense<0.000000e+00> : vector<2x128xf32>
    %42 = tpu.matmul %41, %40, %cst_20 {dimension_numbers = #tpu.dot_dimension_numbers<[1], [0], [0], [1], [0, 0, 1, 1], [], []>} : vector<2x32xbf16>, vector<32x128xbf16>, vector<2x128xf32> -> vector<2x128xf32>
    %43 = arith.addf %37, %42 : vector<2x128xf32>
    %44 = vector.extract_strided_slice %43 {offsets = [0, 0], sizes = [2, 32], strides = [1, 1]} : vector<2x128xf32> to vector<2x32xf32>
    %45 = arith.negf %44 : vector<2x32xf32>
    %46 = math.exp %45 : vector<2x32xf32>
    %cst_21 = arith.constant 1.000000e+00 : f32
    %47 = vector.broadcast %cst_21 : f32 to vector<2x32xf32>
    %48 = arith.addf %47, %46 : vector<2x32xf32>
    %49 = arith.divf %47, %48 : vector<2x32xf32>
    %50 = vector.extract_strided_slice %43 {offsets = [0, 32], sizes = [2, 32], strides = [1, 1]} : vector<2x128xf32> to vector<2x32xf32>
    %51 = arith.negf %50 : vector<2x32xf32>
    %52 = math.exp %51 : vector<2x32xf32>
    %cst_22 = arith.constant 1.000000e+00 : f32
    %53 = vector.broadcast %cst_22 : f32 to vector<2x32xf32>
    %54 = arith.addf %53, %52 : vector<2x32xf32>
    %55 = arith.divf %53, %54 : vector<2x32xf32>
    %56 = vector.extract_strided_slice %43 {offsets = [0, 64], sizes = [2, 32], strides = [1, 1]} : vector<2x128xf32> to vector<2x32xf32>
    %57 = math.tanh %56 : vector<2x32xf32>
    %58 = vector.extract_strided_slice %43 {offsets = [0, 96], sizes = [2, 32], strides = [1, 1]} : vector<2x128xf32> to vector<2x32xf32>
    %59 = arith.negf %58 : vector<2x32xf32>
    %60 = math.exp %59 : vector<2x32xf32>
    %cst_23 = arith.constant 1.000000e+00 : f32
    %61 = vector.broadcast %cst_23 : f32 to vector<2x32xf32>
    %62 = arith.addf %61, %60 : vector<2x32xf32>
    %63 = arith.divf %61, %62 : vector<2x32xf32>
    %64 = arith.mulf %55, %39 : vector<2x32xf32>
    %65 = arith.mulf %49, %57 : vector<2x32xf32>
    %66 = arith.addf %64, %65 : vector<2x32xf32>
    %67 = math.tanh %66 : vector<2x32xf32>
    %68 = arith.mulf %63, %67 : vector<2x32xf32>
    %c0_24 = arith.constant 0 : index
    %c0_25 = arith.constant 0 : index
    %69 = vector.load %arg7[%c0_24, %c0_25] : memref<2x32xf32, #tpu.memory_space<vmem>>, vector<2x32xf32>
    tpu.vector_store %arg7[%c0_24, %c0_25], %35 {strides = array<i32>} : memref<2x32xf32, #tpu.memory_space<vmem>>, vector<2x32xf32>,
    %c0_26 = arith.constant 0 : index
    %c0_27 = arith.constant 0 : index
    %70 = vector.load %arg8[%c0_26, %c0_27] : memref<2x32xf32, #tpu.memory_space<vmem>>, vector<2x32xf32>
    tpu.vector_store %arg8[%c0_26, %c0_27], %33 {strides = array<i32>} : memref<2x32xf32, #tpu.memory_space<vmem>>, vector<2x32xf32>,
    %c0_28 = arith.constant 0 : index
    %c0_29 = arith.constant 0 : index
    %71 = vector.load %arg9[%c0_28, %c0_29] : memref<2x32xf32, #tpu.memory_space<vmem>>, vector<2x32xf32>
    tpu.vector_store %arg9[%c0_28, %c0_29], %68 {strides = array<i32>} : memref<2x32xf32, #tpu.memory_space<vmem>>, vector<2x32xf32>,
    %c0_30 = arith.constant 0 : index
    %c0_31 = arith.constant 0 : index
    %72 = vector.load %arg10[%c0_30, %c0_31] : memref<2x32xf32, #tpu.memory_space<vmem>>, vector<2x32xf32>
    tpu.vector_store %arg10[%c0_30, %c0_31], %66 {strides = array<i32>} : memref<2x32xf32, #tpu.memory_space<vmem>>, vector<2x32xf32>,
    %c0_32 = arith.constant 0 : index
    %c0_33 = arith.constant 0 : index
    %c0_34 = arith.constant 0 : index
    %73 = vector.load %arg5[%c0_32, %c0_33, %c0_34] : memref<1x2x32xf32, #tpu.memory_space<vmem>>, vector<1x2x32xf32>
    %74 = vector.shape_cast %73 : vector<1x2x32xf32> to vector<2x32xf32>
    %75 = vector.shape_cast %35 : vector<2x32xf32> to vector<1x2x32xf32>
    tpu.vector_store %arg5[%c0_32, %c0_33, %c0_34], %75 {strides = array<i32>} : memref<1x2x32xf32, #tpu.memory_space<vmem>>, vector<1x2x32xf32>,
    %c0_35 = arith.constant 0 : index
    %c0_36 = arith.constant 0 : index
    %c0_37 = arith.constant 0 : index
    %76 = vector.load %arg6[%c0_35, %c0_36, %c0_37] : memref<1x2x32xf32, #tpu.memory_space<vmem>>, vector<1x2x32xf32>
    %77 = vector.shape_cast %76 : vector<1x2x32xf32> to vector<2x32xf32>
    %78 = vector.shape_cast %68 : vector<2x32xf32> to vector<1x2x32xf32>
    tpu.vector_store %arg6[%c0_35, %c0_36, %c0_37], %78 {strides = array<i32>} : memref<1x2x32xf32, #tpu.memory_space<vmem>>, vector<1x2x32xf32>,
    return
  }
  func.func @transform_0(%arg0: i32) -> (i32, i32, i32) {
    %c0_i32 = arith.constant 0 : i32
    %c0_i32_0 = arith.constant 0 : i32
    %c0_i32_1 = arith.constant 0 : i32
    return %arg0, %c0_i32, %c0_i32_0 : i32, i32, i32
  }
  func.func @transform_1(%arg0: i32) -> (i32, i32, i32) {
    %c7_i32 = arith.constant 7 : i32
    %0 = arith.subi %c7_i32, %arg0 : i32
    %c0_i32 = arith.constant 0 : i32
    %c0_i32_0 = arith.constant 0 : i32
    %c0_i32_1 = arith.constant 0 : i32
    return %0, %c0_i32, %c0_i32_0 : i32, i32, i32
  }
  func.func @transform_2(%arg0: i32) -> (i32, i32) {
    %c0_i32 = arith.constant 0 : i32
    %c0_i32_0 = arith.constant 0 : i32
    %c0_i32_1 = arith.constant 0 : i32
    return %c0_i32, %c0_i32_0 : i32, i32
  }
  func.func @transform_3(%arg0: i32) -> (i32, i32) {
    %c0_i32 = arith.constant 0 : i32
    %c0_i32_0 = arith.constant 0 : i32
    %c0_i32_1 = arith.constant 0 : i32
    return %c0_i32, %c0_i32_0 : i32, i32
  }
  func.func @transform_4(%arg0: i32) -> (i32, i32, i32) {
    %c0_i32 = arith.constant 0 : i32
    %c0_i32_0 = arith.constant 0 : i32
    %c0_i32_1 = arith.constant 0 : i32
    return %arg0, %c0_i32, %c0_i32_0 : i32, i32, i32
  }
  func.func @transform_5(%arg0: i32) -> (i32, i32, i32) {
    %c7_i32 = arith.constant 7 : i32
    %0 = arith.subi %c7_i32, %arg0 : i32
    %c0_i32 = arith.constant 0 : i32
    %c0_i32_0 = arith.constant 0 : i32
    %c0_i32_1 = arith.constant 0 : i32
    return %0, %c0_i32, %c0_i32_0 : i32, i32, i32
  }
}

module attributes {stable_mosaic.version = 11 : i64} {
  func.func @_linear_kernel(%arg0: i32, %arg1: memref<16x64xf32, #tpu.memory_space<vmem>>, %arg2: memref<64x256xbf16, #tpu.memory_space<vmem>>, %arg3: memref<1x256xf32, #tpu.memory_space<vmem>>, %arg4: memref<16x256xf32, #tpu.memory_space<vmem>>) attributes {dimension_semantics = [#tpu.dimension_semantics<parallel>], iteration_bounds = array<i64: 1>, scalar_prefetch = 0 : i64, scratch_operands = 0 : i64, tpu.core_type = #tpu.core_type<tc>, window_params = [{transform_indices = @transform_0, window_bounds = array<i64: 16, 64>}, {pipeline_mode = #tpu.pipeline_mode<synchronous>, transform_indices = @transform_1, window_bounds = array<i64: 64, 256>}, {pipeline_mode = #tpu.pipeline_mode<synchronous>, transform_indices = @transform_2, window_bounds = array<i64: 1, 256>}, {transform_indices = @transform_3, window_bounds = array<i64: 16, 256>}]} {
    %c0 = arith.constant 0 : index
    %c0_0 = arith.constant 0 : index
    %0 = vector.load %arg1[%c0, %c0_0] : memref<16x64xf32, #tpu.memory_space<vmem>>, vector<16x64xf32>
    %1 = arith.truncf %0 : vector<16x64xf32> to vector<16x64xbf16>
    %c0_1 = arith.constant 0 : index
    %c0_2 = arith.constant 0 : index
    %2 = vector.load %arg2[%c0_1, %c0_2] : memref<64x256xbf16, #tpu.memory_space<vmem>>, vector<64x256xbf16>
    %cst = arith.constant dense<0.000000e+00> : vector<16x256xf32>
    %3 = tpu.matmul %1, %2, %cst {dimension_numbers = #tpu.dot_dimension_numbers<[1], [0], [0], [1], [0, 0, 1, 1], [], []>} : vector<16x64xbf16>, vector<64x256xbf16>, vector<16x256xf32> -> vector<16x256xf32>
    %c0_3 = arith.constant 0 : index
    %c0_4 = arith.constant 0 : index
    %4 = vector.load %arg3[%c0_3, %c0_4] : memref<1x256xf32, #tpu.memory_space<vmem>>, vector<1x256xf32>
    %5 = vector.broadcast %4 : vector<1x256xf32> to vector<16x256xf32>
    %6 = arith.addf %3, %5 : vector<16x256xf32>
    %c0_5 = arith.constant 0 : index
    %c0_6 = arith.constant 0 : index
    %7 = vector.load %arg4[%c0_5, %c0_6] : memref<16x256xf32, #tpu.memory_space<vmem>>, vector<16x256xf32>
    tpu.vector_store %arg4[%c0_5, %c0_6], %6 {strides = array<i32>} : memref<16x256xf32, #tpu.memory_space<vmem>>, vector<16x256xf32>,
    return
  }
  func.func @transform_0(%arg0: i32) -> (i32, i32) {
    %c0_i32 = arith.constant 0 : i32
    %c0_i32_0 = arith.constant 0 : i32
    return %arg0, %c0_i32 : i32, i32
  }
  func.func @transform_1(%arg0: i32) -> (i32, i32) {
    %c0_i32 = arith.constant 0 : i32
    %c0_i32_0 = arith.constant 0 : i32
    %c0_i32_1 = arith.constant 0 : i32
    return %c0_i32, %c0_i32_0 : i32, i32
  }
  func.func @transform_2(%arg0: i32) -> (i32, i32) {
    %c0_i32 = arith.constant 0 : i32
    %c0_i32_0 = arith.constant 0 : i32
    %c0_i32_1 = arith.constant 0 : i32
    return %c0_i32, %c0_i32_0 : i32, i32
  }
  func.func @transform_3(%arg0: i32) -> (i32, i32) {
    %c0_i32 = arith.constant 0 : i32
    %c0_i32_0 = arith.constant 0 : i32
    return %arg0, %c0_i32 : i32, i32
  }
}

module attributes {stable_mosaic.version = 11 : i64} {
  func.func @_attention_kernel(%arg0: i32, %arg1: memref<1x8x64xf32, #tpu.memory_space<vmem>>, %arg2: memref<1x64xf32, #tpu.memory_space<vmem>>, %arg3: memref<1x1xf32, #tpu.memory_space<vmem>>, %arg4: memref<1x1x64xf32, #tpu.memory_space<vmem>>) attributes {dimension_semantics = [#tpu.dimension_semantics<parallel>], iteration_bounds = array<i64: 2>, scalar_prefetch = 0 : i64, scratch_operands = 0 : i64, tpu.core_type = #tpu.core_type<tc>, window_params = [{transform_indices = @transform_0, window_bounds = array<i64: 1, 8, 64>}, {pipeline_mode = #tpu.pipeline_mode<synchronous>, transform_indices = @transform_1, window_bounds = array<i64: 1, 64>}, {pipeline_mode = #tpu.pipeline_mode<synchronous>, transform_indices = @transform_2, window_bounds = array<i64: 1, 1>}, {transform_indices = @transform_3, window_bounds = array<i64: 1, 1, 64>}]} {
    %c0 = arith.constant 0 : index
    %c0_0 = arith.constant 0 : index
    %c0_1 = arith.constant 0 : index
    %0 = vector.load %arg1[%c0, %c0_0, %c0_1] : memref<1x8x64xf32, #tpu.memory_space<vmem>>, vector<1x8x64xf32>
    %1 = vector.shape_cast %0 : vector<1x8x64xf32> to vector<8x64xf32>
    %c0_2 = arith.constant 0 : index
    %c0_3 = arith.constant 0 : index
    %2 = vector.load %arg2[%c0_2, %c0_3] : memref<1x64xf32, #tpu.memory_space<vmem>>, vector<1x64xf32>
    %3 = vector.broadcast %2 : vector<1x64xf32> to vector<8x64xf32>
    %4 = arith.mulf %1, %3 : vector<8x64xf32>
    %cst = arith.constant dense<0.000000e+00> : vector<8xf32>
    %5 = vector.multi_reduction <add>, %4, %cst [1] : vector<8x64xf32> to vector<8xf32>
    %6 = vector.shape_cast %5 : vector<8xf32> to vector<8x1xf32>
    %c0_4 = arith.constant 0 : index
    %c0_5 = arith.constant 0 : index
    %7 = vector.load %arg3[%c0_4, %c0_5] : memref<1x1xf32, #tpu.memory_space<vmem>>, vector<1x1xf32>
    %8 = vector.broadcast %7 : vector<1x1xf32> to vector<8x1xf32>
    %9 = arith.addf %6, %8 : vector<8x1xf32>
    %cst_6 = arith.constant dense<0xFF800000> : vector<1xf32>
    %10 = vector.multi_reduction <maximumf>, %9, %cst_6 [0] : vector<8x1xf32> to vector<1xf32>
    %11 = vector.shape_cast %10 : vector<1xf32> to vector<1x1xf32>
    %12 = vector.broadcast %11 : vector<1x1xf32> to vector<8x1xf32>
    %13 = arith.subf %9, %12 : vector<8x1xf32>
    %14 = math.exp %13 : vector<8x1xf32>
    %cst_7 = arith.constant dense<0.000000e+00> : vector<1xf32>
    %15 = vector.multi_reduction <add>, %14, %cst_7 [0] : vector<8x1xf32> to vector<1xf32>
    %16 = vector.shape_cast %15 : vector<1xf32> to vector<1x1xf32>
    %17 = tpu.reciprocal %16 : vector<1x1xf32> -> vector<1x1xf32>
    %18 = vector.broadcast %17 : vector<1x1xf32> to vector<8x1xf32>
    %19 = arith.mulf %14, %18 : vector<8x1xf32>
    %20 = vector.broadcast %19 : vector<8x1xf32> to vector<8x64xf32>
    %21 = arith.mulf %1, %20 : vector<8x64xf32>
    %cst_8 = arith.constant dense<0.000000e+00> : vector<64xf32>
    %22 = vector.multi_reduction <add>, %21, %cst_8 [0] : vector<8x64xf32> to vector<64xf32>
    %23 = vector.shape_cast %22 : vector<64xf32> to vector<1x64xf32>
    %c0_9 = arith.constant 0 : index
    %c0_10 = arith.constant 0 : index
    %c0_11 = arith.constant 0 : index
    %24 = vector.load %arg4[%c0_9, %c0_10, %c0_11] : memref<1x1x64xf32, #tpu.memory_space<vmem>>, vector<1x1x64xf32>
    %25 = vector.shape_cast %24 : vector<1x1x64xf32> to vector<1x64xf32>
    %26 = vector.shape_cast %23 : vector<1x64xf32> to vector<1x1x64xf32>
    tpu.vector_store %arg4[%c0_9, %c0_10, %c0_11], %26 {strides = array<i32>} : memref<1x1x64xf32, #tpu.memory_space<vmem>>, vector<1x1x64xf32>,
    return
  }
  func.func @transform_0(%arg0: i32) -> (i32, i32, i32) {
    %c0_i32 = arith.constant 0 : i32
    %c0_i32_0 = arith.constant 0 : i32
    %c0_i32_1 = arith.constant 0 : i32
    return %arg0, %c0_i32, %c0_i32_0 : i32, i32, i32
  }
  func.func @transform_1(%arg0: i32) -> (i32, i32) {
    %c0_i32 = arith.constant 0 : i32
    %c0_i32_0 = arith.constant 0 : i32
    %c0_i32_1 = arith.constant 0 : i32
    return %c0_i32, %c0_i32_0 : i32, i32
  }
  func.func @transform_2(%arg0: i32) -> (i32, i32) {
    %c0_i32 = arith.constant 0 : i32
    %c0_i32_0 = arith.constant 0 : i32
    %c0_i32_1 = arith.constant 0 : i32
    return %c0_i32, %c0_i32_0 : i32, i32
  }
  func.func @transform_3(%arg0: i32) -> (i32, i32, i32) {
    %c0_i32 = arith.constant 0 : i32
    %c0_i32_0 = arith.constant 0 : i32
    %c0_i32_1 = arith.constant 0 : i32
    return %arg0, %c0_i32, %c0_i32_0 : i32, i32, i32
  }
}

module attributes {stable_mosaic.version = 11 : i64} {
  func.func @_mlp_head_kernel(%arg0: i32, %arg1: memref<8x64xf32, #tpu.memory_space<vmem>>, %arg2: memref<64x256xbf16, #tpu.memory_space<vmem>>, %arg3: memref<1x256xf32, #tpu.memory_space<vmem>>, %arg4: memref<256x1xbf16, #tpu.memory_space<vmem>>, %arg5: memref<1x1xf32, #tpu.memory_space<vmem>>, %arg6: memref<8x1xf32, #tpu.memory_space<vmem>>) attributes {dimension_semantics = [#tpu.dimension_semantics<parallel>], iteration_bounds = array<i64: 1>, scalar_prefetch = 0 : i64, scratch_operands = 0 : i64, tpu.core_type = #tpu.core_type<tc>, window_params = [{pipeline_mode = #tpu.pipeline_mode<synchronous>, transform_indices = @transform_0, window_bounds = array<i64: 8, 64>}, {pipeline_mode = #tpu.pipeline_mode<synchronous>, transform_indices = @transform_1, window_bounds = array<i64: 64, 256>}, {pipeline_mode = #tpu.pipeline_mode<synchronous>, transform_indices = @transform_2, window_bounds = array<i64: 1, 256>}, {pipeline_mode = #tpu.pipeline_mode<synchronous>, transform_indices = @transform_3, window_bounds = array<i64: 256, 1>}, {pipeline_mode = #tpu.pipeline_mode<synchronous>, transform_indices = @transform_4, window_bounds = array<i64: 1, 1>}, {pipeline_mode = #tpu.pipeline_mode<synchronous>, transform_indices = @transform_5, window_bounds = array<i64: 8, 1>}]} {
    %c0 = arith.constant 0 : index
    %c0_0 = arith.constant 0 : index
    %0 = vector.load %arg1[%c0, %c0_0] : memref<8x64xf32, #tpu.memory_space<vmem>>, vector<8x64xf32>
    %1 = arith.truncf %0 : vector<8x64xf32> to vector<8x64xbf16>
    %c0_1 = arith.constant 0 : index
    %c0_2 = arith.constant 0 : index
    %2 = vector.load %arg2[%c0_1, %c0_2] : memref<64x256xbf16, #tpu.memory_space<vmem>>, vector<64x256xbf16>
    %cst = arith.constant dense<0.000000e+00> : vector<8x256xf32>
    %3 = tpu.matmul %1, %2, %cst {dimension_numbers = #tpu.dot_dimension_numbers<[1], [0], [0], [1], [0, 0, 1, 1], [], []>} : vector<8x64xbf16>, vector<64x256xbf16>, vector<8x256xf32> -> vector<8x256xf32>
    %c0_3 = arith.constant 0 : index
    %c0_4 = arith.constant 0 : index
    %4 = vector.load %arg3[%c0_3, %c0_4] : memref<1x256xf32, #tpu.memory_space<vmem>>, vector<1x256xf32>
    %5 = vector.broadcast %4 : vector<1x256xf32> to vector<8x256xf32>
    %6 = arith.addf %3, %5 : vector<8x256xf32>
    %cst_5 = arith.constant 0.000000e+00 : f32
    %7 = vector.broadcast %cst_5 : f32 to vector<8x256xf32>
    %8 = arith.maximumf %6, %7 : vector<8x256xf32>
    %9 = arith.truncf %8 : vector<8x256xf32> to vector<8x256xbf16>
    %c0_6 = arith.constant 0 : index
    %c0_7 = arith.constant 0 : index
    %10 = vector.load %arg4[%c0_6, %c0_7] : memref<256x1xbf16, #tpu.memory_space<vmem>>, vector<256x1xbf16>
    %cst_8 = arith.constant dense<0.000000e+00> : vector<8x1xf32>
    %11 = tpu.matmul %9, %10, %cst_8 {dimension_numbers = #tpu.dot_dimension_numbers<[1], [0], [0], [1], [0, 0, 1, 1], [], []>} : vector<8x256xbf16>, vector<256x1xbf16>, vector<8x1xf32> -> vector<8x1xf32>
    %c0_9 = arith.constant 0 : index
    %c0_10 = arith.constant 0 : index
    %12 = vector.load %arg5[%c0_9, %c0_10] : memref<1x1xf32, #tpu.memory_space<vmem>>, vector<1x1xf32>
    %13 = vector.broadcast %12 : vector<1x1xf32> to vector<8x1xf32>
    %14 = arith.addf %11, %13 : vector<8x1xf32>
    %c0_11 = arith.constant 0 : index
    %c0_12 = arith.constant 0 : index
    %15 = vector.load %arg6[%c0_11, %c0_12] : memref<8x1xf32, #tpu.memory_space<vmem>>, vector<8x1xf32>
    tpu.vector_store %arg6[%c0_11, %c0_12], %14 {strides = array<i32>} : memref<8x1xf32, #tpu.memory_space<vmem>>, vector<8x1xf32>,
    return
  }
  func.func @transform_0(%arg0: i32) -> (i32, i32) {
    %c0_i32 = arith.constant 0 : i32
    %c0_i32_0 = arith.constant 0 : i32
    %c0_i32_1 = arith.constant 0 : i32
    return %c0_i32, %c0_i32_0 : i32, i32
  }
  func.func @transform_1(%arg0: i32) -> (i32, i32) {
    %c0_i32 = arith.constant 0 : i32
    %c0_i32_0 = arith.constant 0 : i32
    %c0_i32_1 = arith.constant 0 : i32
    return %c0_i32, %c0_i32_0 : i32, i32
  }
  func.func @transform_2(%arg0: i32) -> (i32, i32) {
    %c0_i32 = arith.constant 0 : i32
    %c0_i32_0 = arith.constant 0 : i32
    %c0_i32_1 = arith.constant 0 : i32
    return %c0_i32, %c0_i32_0 : i32, i32
  }
  func.func @transform_3(%arg0: i32) -> (i32, i32) {
    %c0_i32 = arith.constant 0 : i32
    %c0_i32_0 = arith.constant 0 : i32
    %c0_i32_1 = arith.constant 0 : i32
    return %c0_i32, %c0_i32_0 : i32, i32
  }
  func.func @transform_4(%arg0: i32) -> (i32, i32) {
    %c0_i32 = arith.constant 0 : i32
    %c0_i32_0 = arith.constant 0 : i32
    %c0_i32_1 = arith.constant 0 : i32
    return %c0_i32, %c0_i32_0 : i32, i32
  }
  func.func @transform_5(%arg0: i32) -> (i32, i32) {
    %c0_i32 = arith.constant 0 : i32
    %c0_i32_0 = arith.constant 0 : i32
    %c0_i32_1 = arith.constant 0 : i32
    return %c0_i32, %c0_i32_0 : i32, i32
  }
}

</mosaic_0001>

<llo_original>
// kernel: lstm_classifier_forward.6
$region0: #{lstm_classifier_forward.6}
  #allocation0 [shape = 'u32[]', space=smem, size = 0x4, offset = 0x4, fixed_abs, tag = 'smem constant byte address 0x4 - core index']
  #allocation1 [shape = 'u32[144,128]{1,0:T(1,128)}', space=vmem, size = 0x12000, scoped, tag = 'internal scratch']
  %s0 = inlined_call_operand.vmem [shape: f32[16,16], index: 0, kind: input, shape index: {}]
  %s1 = inlined_call_operand.vmem [shape: bf16[16,256], index: 1, kind: input, shape index: {}]
  %s2 = inlined_call_operand.vmem [shape: f32[1,256], index: 2, kind: input, shape index: {}]
  %s3 = inlined_call_operand.vmem [shape: f32[16,256], index: 3, kind: output, shape index: {}]
  %s4 = sld [smem:[#allocation0]]
  $region22: #{lstm_classifier_forward.6} parent=0
    _
  %s6 = ssub.s32 1, %s4
  %s7 = scalar_select 0, %s6, %s4
  // Predicated region
  $region2: #{lstm_classifier_forward.6} parent=0 // pred_check
    _
  $region3: #{lstm_classifier_forward.6} parent=0 // pred_check_branch
    %9 = sbr.rel (0) target = $region5
  $region4: #{lstm_classifier_forward.6} parent=0 // pred_region
    _
  $region5: #{lstm_classifier_forward.6} parent=0 // pred_fallthru
    _
  // Predicated region
  $region6: #{lstm_classifier_forward.6} parent=0 // pred_check
    _
  $region7: #{lstm_classifier_forward.6} parent=0 // pred_check_branch
    %11 = sbr.rel (0) target = $region9
  $region8: #{lstm_classifier_forward.6} parent=0 // pred_region
    _
  $region9: #{lstm_classifier_forward.6} parent=0 // pred_fallthru
    _
  // Predicated region
  $region10: #{lstm_classifier_forward.6} parent=0 // pred_check
    _
  $region11: #{lstm_classifier_forward.6} parent=0 // pred_check_branch
    %13 = sbr.rel (0) target = $region13
  $region12: #{lstm_classifier_forward.6} parent=0 // pred_region
    _
  $region13: #{lstm_classifier_forward.6} parent=0 // pred_fallthru
    _
  %v15 = vld [vmem:[%s0] sm:$0xff]
  %v16 = vld [vmem:[%s0 + $0x8] sm:$0xff]
  %v17 = vpack.c.bf16 %v16, %v15
  %v18 = vld [vmem:[%s1] sm:$0xff]
  %v19 = vld [vmem:[%s1 + $0x8] sm:$0xff]
  %v20 = vld [vmem:[%s2] sm:$0x3]
  %v22 = vlaneseq
  %v23 = vshrl.u32 %v22, 7
  %v24 = vsub.s32 0, %v23
  %v25 = vrot.slane %v20, %v24
  %v26 = vlaneseq
  %v27 = vshrl.u32 %v26, 7
  %v28 = vsub.s32 1, %v27
  %v29 = vrot.slane %v20, %v28
  %v34 = vunpack.c.l.b16 %v18
  %v35 = vunpack.c.h.b16 %v18
  %v36 = vunpack.c.l.b16 %v19
  %v37 = vunpack.c.h.b16 %v19
  %v38 = vpack.c.b16 %v36, %v34
  %v39 = vpack.c.b16 %v37, %v35
  %vm42 = vcmask 130048
  %v44 = vsel %vm42, %v17, 0
  %46 = vmatprep.subr.bf16.mxu0 %v39
  %47 = vmatpush1.bf16.msra.mxu0 %v38
  %48 = vmatprep.subr.bf16.mxu0 0
  %49 = vmatpush1.bf16.msra.mxu0 0
  %50 = vmatprep.subr.bf16.mxu0 0
  %51 = vmatpush1.bf16.msra.mxu0 0
  %52 = vmatprep.subr.bf16.mxu0 0
  %53 = vmatpush1.bf16.msra.mxu0 0
  %54 = vmatprep.subr.bf16.mxu0 0
  %55 = vmatpush1.bf16.msra.mxu0 0
  %56 = vmatprep.subr.bf16.mxu0 0
  %57 = vmatpush1.bf16.msra.mxu0 0
  %58 = vmatprep.subr.bf16.mxu0 0
  %59 = vmatpush1.bf16.msra.mxu0 0
  %60 = vmatprep.subr.bf16.mxu0 0
  %61 = vmatpush1.bf16.msra.mxu0 0
  %62 = vmatprep.subr.bf16.mxu0 0
  %63 = vmatpush1.bf16.msra.mxu0 0
  %64 = vmatprep.subr.bf16.mxu0 0
  %65 = vmatpush1.bf16.msra.mxu0 0
  %66 = vmatprep.subr.bf16.mxu0 0
  %67 = vmatpush1.bf16.msra.mxu0 0
  %68 = vmatprep.subr.bf16.mxu0 0
  %69 = vmatpush1.bf16.msra.mxu0 0
  %70 = vmatprep.subr.bf16.mxu0 0
  %71 = vmatpush1.bf16.msra.mxu0 0
  %72 = vmatprep.subr.bf16.mxu0 0
  %73 = vmatpush1.bf16.msra.mxu0 0
  %74 = vmatprep.subr.bf16.mxu0 0
  %75 = vmatpush1.bf16.msra.mxu0 0
  %76 = vmatprep.subr.bf16.mxu0 0
  %77 = vmatpush1.bf16.msra.mxu0 0
  %78 = vmatprep.mubr.bf16.mxu0 0
  %79 = vmatmul.mubr.bf16.gmra.mrb[0].mxu0 %v44
  %v80 = vpop.f32.mrb[0].mxu0
  %v81 = vadd.f32 %v25, %v80
  %v82 = vpop.f32.mrb[0].mxu0
  %v83 = vadd.f32 %v29, %v82
  %v84 = vpop.f32.mrb[0].mxu0
  %v85 = vadd.f32 %v25, %v84
  %v86 = vpop.f32.mrb[0].mxu0
  %v87 = vadd.f32 %v29, %v86
  %88 = vdwg.mxu0
  %89 = vst [vmem:[%s3] sm:$0xff] %v81
  %90 = vst [vmem:[%s3 + $0x8] sm:$0xff] %v83
  %91 = vst [vmem:[%s3 + $0x10] sm:$0xff] %v85
  %92 = vst [vmem:[%s3 + $0x18] sm:$0xff] %v87
  // Predicated region
  $region14: #{lstm_classifier_forward.6} parent=0 // pred_check
    _
  $region15: #{lstm_classifier_forward.6} parent=0 // pred_check_branch
    %94 = sbr.rel (0) target = $region17
  $region16: #{lstm_classifier_forward.6} parent=0 // pred_region
    _
  $region17: #{lstm_classifier_forward.6} parent=0 // pred_fallthru
    _
  // Predicated region
  $region18: #{lstm_classifier_forward.6} parent=0 // pred_check
    _
  $region19: #{lstm_classifier_forward.6} parent=0 // pred_check_branch
    %96 = sbr.rel (0) target = $region21
  $region20: #{lstm_classifier_forward.6} parent=0 // pred_region
    _
  $region21: #{lstm_classifier_forward.6} parent=0 // pred_fallthru
    _

// kernel: lstm_classifier_forward.8
$region0: #{lstm_classifier_forward.8}
  #allocation0 [shape = 'u32[]', space=smem, size = 0x4, offset = 0x4, fixed_abs, tag = 'smem constant byte address 0x4 - core index']
  #allocation1 [shape = 'u32[144,128]{1,0:T(1,128)}', space=vmem, size = 0x12000, scoped, tag = 'internal scratch']
  %s0 = inlined_call_operand.vmem [shape: f32[16,64], index: 0, kind: input, shape index: {}]
  %s1 = inlined_call_operand.vmem [shape: bf16[64,256], index: 1, kind: input, shape index: {}]
  %s2 = inlined_call_operand.vmem [shape: f32[1,256], index: 2, kind: input, shape index: {}]
  %s3 = inlined_call_operand.vmem [shape: f32[16,256], index: 3, kind: output, shape index: {}]
  %s4 = sld [smem:[#allocation0]]
  $region22: #{lstm_classifier_forward.8} parent=0
    _
  %s6 = ssub.s32 1, %s4
  %s7 = scalar_select 0, %s6, %s4
  // Predicated region
  $region2: #{lstm_classifier_forward.8} parent=0 // pred_check
    _
  $region3: #{lstm_classifier_forward.8} parent=0 // pred_check_branch
    %9 = sbr.rel (0) target = $region5
  $region4: #{lstm_classifier_forward.8} parent=0 // pred_region
    _
  $region5: #{lstm_classifier_forward.8} parent=0 // pred_fallthru
    _
  // Predicated region
  $region6: #{lstm_classifier_forward.8} parent=0 // pred_check
    _
  $region7: #{lstm_classifier_forward.8} parent=0 // pred_check_branch
    %11 = sbr.rel (0) target = $region9
  $region8: #{lstm_classifier_forward.8} parent=0 // pred_region
    _
  $region9: #{lstm_classifier_forward.8} parent=0 // pred_fallthru
    _
  // Predicated region
  $region10: #{lstm_classifier_forward.8} parent=0 // pred_check
    _
  $region11: #{lstm_classifier_forward.8} parent=0 // pred_check_branch
    %13 = sbr.rel (0) target = $region13
  $region12: #{lstm_classifier_forward.8} parent=0 // pred_region
    _
  $region13: #{lstm_classifier_forward.8} parent=0 // pred_fallthru
    _
  %v15 = vld [vmem:[%s0] sm:$0xff]
  %v16 = vld [vmem:[%s0 + $0x8] sm:$0xff]
  %v17 = vpack.c.bf16 %v16, %v15
  %v18 = vld [vmem:[%s1] sm:$0xff]
  %v19 = vld [vmem:[%s1 + $0x8] sm:$0xff]
  %v20 = vld [vmem:[%s1 + $0x10] sm:$0xff]
  %v21 = vld [vmem:[%s1 + $0x18] sm:$0xff]
  %v22 = vld [vmem:[%s1 + $0x20] sm:$0xff]
  %v23 = vld [vmem:[%s1 + $0x28] sm:$0xff]
  %v24 = vld [vmem:[%s1 + $0x30] sm:$0xff]
  %v25 = vld [vmem:[%s1 + $0x38] sm:$0xff]
  %v26 = vld [vmem:[%s2] sm:$0x3]
  %v28 = vlaneseq
  %v29 = vshrl.u32 %v28, 7
  %v30 = vsub.s32 0, %v29
  %v31 = vrot.slane %v26, %v30
  %v32 = vlaneseq
  %v33 = vshrl.u32 %v32, 7
  %v34 = vsub.s32 1, %v33
  %v35 = vrot.slane %v26, %v34
  %v46 = vunpack.c.l.b16 %v18
  %v47 = vunpack.c.h.b16 %v18
  %v48 = vunpack.c.l.b16 %v19
  %v49 = vunpack.c.h.b16 %v19
  %v50 = vunpack.c.l.b16 %v20
  %v51 = vunpack.c.h.b16 %v20
  %v52 = vunpack.c.l.b16 %v21
  %v53 = vunpack.c.h.b16 %v21
  %v54 = vunpack.c.l.b16 %v22
  %v55 = vunpack.c.h.b16 %v22
  %v56 = vunpack.c.l.b16 %v23
  %v57 = vunpack.c.h.b16 %v23
  %v58 = vunpack.c.l.b16 %v24
  %v59 = vunpack.c.h.b16 %v24
  %v60 = vunpack.c.l.b16 %v25
  %v61 = vunpack.c.h.b16 %v25
  %v62 = vpack.c.b16 %v48, %v46
  %v63 = vpack.c.b16 %v49, %v47
  %v64 = vpack.c.b16 %v52, %v50
  %v65 = vpack.c.b16 %v53, %v51
  %v66 = vpack.c.b16 %v56, %v54
  %v67 = vpack.c.b16 %v57, %v55
  %v68 = vpack.c.b16 %v60, %v58
  %v69 = vpack.c.b16 %v61, %v59
  %vm78 = vcmask 523264
  %v80 = vsel %vm78, %v17, 0
  %82 = vmatprep.subr.bf16.mxu0 %v63
  %83 = vmatpush1.bf16.msra.mxu0 %v62
  %84 = vmatprep.subr.bf16.mxu0 %v65
  %85 = vmatpush1.bf16.msra.mxu0 %v64
  %86 = vmatprep.subr.bf16.mxu0 %v67
  %87 = vmatpush1.bf16.msra.mxu0 %v66
  %88 = vmatprep.subr.bf16.mxu0 %v69
  %89 = vmatpush1.bf16.msra.mxu0 %v68
  %90 = vmatprep.subr.bf16.mxu0 0
  %91 = vmatpush1.bf16.msra.mxu0 0
  %92 = vmatprep.subr.bf16.mxu0 0
  %93 = vmatpush1.bf16.msra.mxu0 0
  %94 = vmatprep.subr.bf16.mxu0 0
  %95 = vmatpush1.bf16.msra.mxu0 0
  %96 = vmatprep.subr.bf16.mxu0 0
  %97 = vmatpush1.bf16.msra.mxu0 0
  %98 = vmatprep.subr.bf16.mxu0 0
  %99 = vmatpush1.bf16.msra.mxu0 0
  %100 = vmatprep.subr.bf16.mxu0 0
  %101 = vmatpush1.bf16.msra.mxu0 0
  %102 = vmatprep.subr.bf16.mxu0 0
  %103 = vmatpush1.bf16.msra.mxu0 0
  %104 = vmatprep.subr.bf16.mxu0 0
  %105 = vmatpush1.bf16.msra.mxu0 0
  %106 = vmatprep.subr.bf16.mxu0 0
  %107 = vmatpush1.bf16.msra.mxu0 0
  %108 = vmatprep.subr.bf16.mxu0 0
  %109 = vmatpush1.bf16.msra.mxu0 0
  %110 = vmatprep.subr.bf16.mxu0 0
  %111 = vmatpush1.bf16.msra.mxu0 0
  %112 = vmatprep.subr.bf16.mxu0 0
  %113 = vmatpush1.bf16.msra.mxu0 0
  %114 = vmatprep.mubr.bf16.mxu0 0
  %115 = vmatmul.mubr.bf16.gmra.mrb[0].mxu0 %v80
  %v116 = vpop.f32.mrb[0].mxu0
  %v117 = vadd.f32 %v31, %v116
  %v118 = vpop.f32.mrb[0].mxu0
  %v119 = vadd.f32 %v35, %v118
  %v120 = vpop.f32.mrb[0].mxu0
  %v121 = vadd.f32 %v31, %v120
  %v122 = vpop.f32.mrb[0].mxu0
  %v123 = vadd.f32 %v35, %v122
  %124 = vdwg.mxu0
  %125 = vst [vmem:[%s3] sm:$0xff] %v117
  %126 = vst [vmem:[%s3 + $0x8] sm:$0xff] %v119
  %127 = vst [vmem:[%s3 + $0x10] sm:$0xff] %v121
  %128 = vst [vmem:[%s3 + $0x18] sm:$0xff] %v123
  // Predicated region
  $region14: #{lstm_classifier_forward.8} parent=0 // pred_check
    _
  $region15: #{lstm_classifier_forward.8} parent=0 // pred_check_branch
    %130 = sbr.rel (0) target = $region17
  $region16: #{lstm_classifier_forward.8} parent=0 // pred_region
    _
  $region17: #{lstm_classifier_forward.8} parent=0 // pred_fallthru
    _
  // Predicated region
  $region18: #{lstm_classifier_forward.8} parent=0 // pred_check
    _
  $region19: #{lstm_classifier_forward.8} parent=0 // pred_check_branch
    %132 = sbr.rel (0) target = $region21
  $region20: #{lstm_classifier_forward.8} parent=0 // pred_region
    _
  $region21: #{lstm_classifier_forward.8} parent=0 // pred_fallthru
    _

// kernel: lstm_classifier_forward.7
$region0: #{lstm_classifier_forward.7}
  #allocation0 [shape = 'u32[]', space=smem, size = 0x4, offset = 0x4, fixed_abs, tag = 'smem constant byte address 0x4 - core index']
  #allocation1 [shape = 'u32[144,128]{1,0:T(1,128)}', space=vmem, size = 0x12000, scoped, tag = 'internal scratch']
  #allocation2 [shape = 'f32[2,32]{1,0:T(2,128)}', space=vmem, size = 0x400, scoped, tag = 'scratch operand']
  #allocation3 [shape = 'f32[2,32]{1,0:T(2,128)}', space=vmem, size = 0x400, scoped, tag = 'scratch operand']
  #allocation4 [shape = 'f32[2,32]{1,0:T(2,128)}', space=vmem, size = 0x400, scoped, tag = 'scratch operand']
  #allocation5 [shape = 'f32[2,32]{1,0:T(2,128)}', space=vmem, size = 0x400, scoped, tag = 'scratch operand']
  %s0 = inlined_call_operand.vmem [shape: f32[8,2,256], index: 0, kind: input, shape index: {}, may-alias: {0,1}]
  %s1 = inlined_call_operand.vmem [shape: f32[8,2,256], index: 1, kind: input, shape index: {}, may-alias: {0,1}]
  %s2 = inlined_call_operand.vmem [shape: bf16[32,128], index: 2, kind: input, shape index: {}]
  %s3 = inlined_call_operand.vmem [shape: bf16[32,128], index: 3, kind: input, shape index: {}]
  %s4 = inlined_call_operand.vmem [shape: f32[8,2,32], index: 4, kind: output, shape index: {0}]
  %s5 = inlined_call_operand.vmem [shape: f32[8,2,32], index: 5, kind: output, shape index: {1}]
  %6 = xla_tuple %s4, %s5
  %s7 = sld [smem:[#allocation0]]
  $region61: #{lstm_classifier_forward.7} parent=0
    _
  %s9 = ssub.s32 1, %s7
  %s10 = scalar_select 0, %s9, %s7
  loop: start=0, step=1, limit=10
  $region2: #{lstm_classifier_forward.7} parent=0 // loop_pre_header
    _
  $region3: #{lstm_classifier_forward.7} parent=0 // loop_header
    %s12 = sphi 0, %s16
    %p13 = scmp.ge.s32.totalorder %s12, 10
    %s22 = sphi 0, %s24
    %s25 = sphi 0, %s22
    %s26 = sphi 0, %s25
    %s42 = sphi 0, %s26
    %s50 = sphi 0, %s52
    %s53 = sphi 0, %s50
    %s54 = sphi 0, %s53
    %s70 = sphi 0, %s54
    %s74 = sphi 0, %s74
    %s76 = sphi 0, %s74
    %s77 = sphi 0, %s76
    %s91 = sphi 0, %s77
    %s95 = sphi 0, %s95
    %s97 = sphi 0, %s95
    %s98 = sphi 0, %s97
    %s112 = sphi 0, %s98
    %s118 = sphi 0, %s120
    %s121 = sphi 0, %s118
    %s122 = sphi 0, %s121
    %s138 = sphi 0, %s122
    %s146 = sphi 0, %s148
    %s149 = sphi 0, %s146
    %s150 = sphi 0, %s149
    %s166 = sphi 0, %s150
  $region4: #{lstm_classifier_forward.7} parent=0 // loop_header_branch
    %15 = sbr.rel (%p13) target = $region8
  $region5: #{lstm_classifier_forward.7} parent=0 // loop_body
    %s17 = ssub.s32 %s12, 1
    %s18 = ssub.s32 %s12, 2
    %s19 = sadd.s32 %s12, 1
    %s20 = ssub.s32 %s12, %s19
    %p21 = scmp.eq.s32.totalorder %s20, 0
    %s23 = sadd.s32 %s22, 1
    %s24 = scalar_select %p21, %s22, %s23
    %p27 = pneg %p21
    %p28 = scmp.eq.s32.totalorder %s12, 7
    %p29 = por %p27, %p28
    %p30 = scmp.ne.s32.totalorder %s22, %s25
    %p31 = scmp.eq.s32.totalorder %s12, 0
    %p32 = por %p30, %p31
    %p33 = scmp.ne.s32.totalorder %s22, %s25
    %p34 = scmp.eq.s32.totalorder %s17, 7
    %p35 = por %p33, %p34
    %p36 = scmp.ne.s32.totalorder %s25, %s26
    %p37 = scmp.eq.s32.totalorder %s17, 0
    %p38 = por %p36, %p37
    %p39 = scmp.ne.s32.totalorder %s25, %s26
    %p40 = scmp.eq.s32.totalorder %s18, 7
    %p41 = por %p39, %p40
    %p43 = scmp.ne.s32.totalorder %s26, %s42
    %p44 = scmp.eq.s32.totalorder %s18, 0
    %p45 = por %p43, %p44
    %s46 = ssub.s32 7, %s12
    %s47 = ssub.s32 7, %s19
    %s48 = ssub.s32 %s46, %s47
    %p49 = scmp.eq.s32.totalorder %s48, 0
    %s51 = sadd.s32 %s50, 1
    %s52 = scalar_select %p49, %s50, %s51
    %p55 = pneg %p49
    %p56 = scmp.eq.s32.totalorder %s12, 7
    %p57 = por %p55, %p56
    %p58 = scmp.ne.s32.totalorder %s50, %s53
    %p59 = scmp.eq.s32.totalorder %s12, 0
    %p60 = por %p58, %p59
    %p61 = scmp.ne.s32.totalorder %s50, %s53
    %p62 = scmp.eq.s32.totalorder %s17, 7
    %p63 = por %p61, %p62
    %p64 = scmp.ne.s32.totalorder %s53, %s54
    %p65 = scmp.eq.s32.totalorder %s17, 0
    %p66 = por %p64, %p65
    %p67 = scmp.ne.s32.totalorder %s53, %s54
    %p68 = scmp.eq.s32.totalorder %s18, 7
    %p69 = por %p67, %p68
    %p71 = scmp.ne.s32.totalorder %s54, %s70
    %p72 = scmp.eq.s32.totalorder %s18, 0
    %p73 = por %p71, %p72
    %s75 = sadd.s32 %s74, 1
    %p78 = scmp.eq.s32.totalorder %s12, 7
    %p79 = scmp.ne.s32.totalorder %s74, %s76
    %p80 = scmp.eq.s32.totalorder %s12, 0
    %p81 = por %p79, %p80
    %p82 = scmp.ne.s32.totalorder %s74, %s76
    %p83 = scmp.eq.s32.totalorder %s17, 7
    %p84 = por %p82, %p83
    %p85 = scmp.ne.s32.totalorder %s76, %s77
    %p86 = scmp.eq.s32.totalorder %s17, 0
    %p87 = por %p85, %p86
    %p88 = scmp.ne.s32.totalorder %s76, %s77
    %p89 = scmp.eq.s32.totalorder %s18, 7
    %p90 = por %p88, %p89
    %p92 = scmp.ne.s32.totalorder %s77, %s91
    %p93 = scmp.eq.s32.totalorder %s18, 0
    %p94 = por %p92, %p93
    %s96 = sadd.s32 %s95, 1
    %p99 = scmp.eq.s32.totalorder %s12, 7
    %p100 = scmp.ne.s32.totalorder %s95, %s97
    %p101 = scmp.eq.s32.totalorder %s12, 0
    %p102 = por %p100, %p101
    %p103 = scmp.ne.s32.totalorder %s95, %s97
    %p104 = scmp.eq.s32.totalorder %s17, 7
    %p105 = por %p103, %p104
    %p106 = scmp.ne.s32.totalorder %s97, %s98
    %p107 = scmp.eq.s32.totalorder %s17, 0
    %p108 = por %p106, %p107
    %p109 = scmp.ne.s32.totalorder %s97, %s98
    %p110 = scmp.eq.s32.totalorder %s18, 7
    %p111 = por %p109, %p110
    %p113 = scmp.ne.s32.totalorder %s98, %s112
    %p114 = scmp.eq.s32.totalorder %s18, 0
    %p115 = por %p113, %p114
    %s116 = ssub.s32 %s12, %s19
    %p117 = scmp.eq.s32.totalorder %s116, 0
    %s119 = sadd.s32 %s118, 1
    %s120 = scalar_select %p117, %s118, %s119
    %p123 = pneg %p117
    %p124 = scmp.eq.s32.totalorder %s12, 7
    %p125 = por %p123, %p124
    %p126 = scmp.ne.s32.totalorder %s118, %s121
    %p127 = scmp.eq.s32.totalorder %s12, 0
    %p128 = por %p126, %p127
    %p129 = scmp.ne.s32.totalorder %s118, %s121
    %p130 = scmp.eq.s32.totalorder %s17, 7
    %p131 = por %p129, %p130
    %p132 = scmp.ne.s32.totalorder %s121, %s122
    %p133 = scmp.eq.s32.totalorder %s17, 0
    %p134 = por %p132, %p133
    %p135 = scmp.ne.s32.totalorder %s121, %s122
    %p136 = scmp.eq.s32.totalorder %s18, 7
    %p137 = por %p135, %p136
    %p139 = scmp.ne.s32.totalorder %s122, %s138
    %p140 = scmp.eq.s32.totalorder %s18, 0
    %p141 = por %p139, %p140
    %s142 = ssub.s32 7, %s12
    %s143 = ssub.s32 7, %s19
    %s144 = ssub.s32 %s142, %s143
    %p145 = scmp.eq.s32.totalorder %s144, 0
    %s147 = sadd.s32 %s146, 1
    %s148 = scalar_select %p145, %s146, %s147
    %p151 = pneg %p145
    %p152 = scmp.eq.s32.totalorder %s12, 7
    %p153 = por %p151, %p152
    %p154 = scmp.ne.s32.totalorder %s146, %s149
    %p155 = scmp.eq.s32.totalorder %s12, 0
    %p156 = por %p154, %p155
    %p157 = scmp.ne.s32.totalorder %s146, %s149
    %p158 = scmp.eq.s32.totalorder %s17, 7
    %p159 = por %p157, %p158
    %p160 = scmp.ne.s32.totalorder %s149, %s150
    %p161 = scmp.eq.s32.totalorder %s17, 0
    %p162 = por %p160, %p161
    %p163 = scmp.ne.s32.totalorder %s149, %s150
    %p164 = scmp.eq.s32.totalorder %s18, 7
    %p165 = por %p163, %p164
    %p167 = scmp.ne.s32.totalorder %s150, %s166
    %p168 = scmp.eq.s32.totalorder %s18, 0
    %p169 = por %p167, %p168
    %p170 = scmp.le.s32.totalorder 1, %s12
    %p171 = scmp.lt.s32.totalorder %s12, 9
    %p172 = pnand %p170, %p171
    %p173 = pneg %p172
    // Predicated region
    $region9: #{lstm_classifier_forward.7} parent=5 // pred_check
      _
    $region10: #{lstm_classifier_forward.7} parent=5 // pred_check_branch
      %175 = sbr.rel (%p172) target = $region12
    $region11: #{lstm_classifier_forward.7} parent=5 // pred_region
      %s176 = ssub.s32 %s12, 1
      // Predicated region
      $region13: #{lstm_classifier_forward.7} parent=11 // pred_check
        %p177 = pneg %p87
      $region14: #{lstm_classifier_forward.7} parent=11 // pred_check_branch
        %179 = sbr.rel (%p177) target = $region16
      $region15: #{lstm_classifier_forward.7} parent=11 // pred_region
        _
      $region16: #{lstm_classifier_forward.7} parent=11 // pred_fallthru
        _
      // Predicated region
      $region17: #{lstm_classifier_forward.7} parent=11 // pred_check
        %p180 = pneg %p108
      $region18: #{lstm_classifier_forward.7} parent=11 // pred_check_branch
        %182 = sbr.rel (%p180) target = $region20
      $region19: #{lstm_classifier_forward.7} parent=11 // pred_region
        _
      $region20: #{lstm_classifier_forward.7} parent=11 // pred_fallthru
        _
    $region12: #{lstm_classifier_forward.7} parent=5 // pred_fallthru
      _
    %p183 = scmp.lt.s32.totalorder %s12, 8
    // Predicated region
    $region21: #{lstm_classifier_forward.7} parent=5 // pred_check
      %p184 = pneg %p183
    $region22: #{lstm_classifier_forward.7} parent=5 // pred_check_branch
      %186 = sbr.rel (%p184) target = $region24
    $region23: #{lstm_classifier_forward.7} parent=5 // pred_region
      // Predicated region
      $region25: #{lstm_classifier_forward.7} parent=23 // pred_check
        %p187 = pneg %p32
      $region26: #{lstm_classifier_forward.7} parent=23 // pred_check_branch
        %189 = sbr.rel (%p187) target = $region28
      $region27: #{lstm_classifier_forward.7} parent=23 // pred_region
        %p190 = scmp.lt.s32.totalorder %s12, 7
        %s191 = scalar_select %p190, %s12, 7
        %s192 = smul.addr %s191, 2
        %s193 = smul.addr %s192, 2
        %s194 = scalar_lea.vmem %s0, %s193
      $region28: #{lstm_classifier_forward.7} parent=23 // pred_fallthru
        _
      // Predicated region
      $region29: #{lstm_classifier_forward.7} parent=23 // pred_check
        %p195 = pneg %p60
      $region30: #{lstm_classifier_forward.7} parent=23 // pred_check_branch
        %197 = sbr.rel (%p195) target = $region32
      $region31: #{lstm_classifier_forward.7} parent=23 // pred_region
        %s198 = ssub.s32 7, %s12
        %p199 = scmp.lt.s32.totalorder %s198, 7
        %s200 = scalar_select %p199, %s198, 7
        %s201 = smul.addr %s200, 2
        %s202 = smul.addr %s201, 2
        %s203 = scalar_lea.vmem %s1, %s202
        %s204 = ssub.s32 7, %s12
      $region32: #{lstm_classifier_forward.7} parent=23 // pred_fallthru
        _
    $region24: #{lstm_classifier_forward.7} parent=5 // pred_fallthru
      _
    %p205 = scmp.le.s32.totalorder 1, %s12
    %p206 = scmp.lt.s32.totalorder %s12, 9
    %p207 = pnand %p205, %p206
    %p208 = pneg %p207
    // Predicated region
    $region33: #{lstm_classifier_forward.7} parent=5 // pred_check
      _
    $region34: #{lstm_classifier_forward.7} parent=5 // pred_check_branch
      %210 = sbr.rel (%p207) target = $region36
    $region35: #{lstm_classifier_forward.7} parent=5 // pred_region
      %s211 = ssub.s32 %s12, 1
      %p212 = scmp.lt.s32.totalorder %s17, 7
      %s213 = scalar_select %p212, %s17, 7
      %s214 = smul.addr %s213, 2
      %s215 = smul.addr %s214, 2
      %s216 = scalar_lea.vmem %s0, %s215
      %p217 = pneg %p38
      %p218 = pneg %p35
      %s219 = ssub.s32 7, %s17
      %p220 = scmp.lt.s32.totalorder %s219, 7
      %s221 = scalar_select %p220, %s219, 7
      %s222 = smul.addr %s221, 2
      %s223 = smul.addr %s222, 2
      %s224 = scalar_lea.vmem %s1, %s223
      %p225 = pneg %p66
      %p226 = pneg %p63
      %p227 = pneg %p87
      %p228 = pneg %p84
      %p229 = pneg %p108
      %p230 = pneg %p105
      %p231 = pneg %p134
      %p232 = pneg %p131
      %p233 = scmp.lt.s32.totalorder %s17, 7
      %s234 = scalar_select %p233, %s17, 7
      %s235 = smul.addr %s234, 2
      %s236 = scalar_lea.vmem %s4, %s235
      %p237 = pneg %p162
      %p238 = pneg %p159
      %s239 = ssub.s32 7, %s17
      %p240 = scmp.lt.s32.totalorder %s239, 7
      %s241 = scalar_select %p240, %s239, 7
      %s242 = smul.addr %s241, 2
      %s243 = scalar_lea.vmem %s5, %s242
      %p244 = scmp.lt.s32.totalorder %s17, 7
      %s245 = scalar_select %p244, %s17, 7
      %s246 = smul.addr %s245, 2
      %s247 = smul.addr %s246, 2
      %s248 = scalar_lea.vmem %s0, %s247
      %s249 = ssub.s32 7, %s17
      %p250 = scmp.lt.s32.totalorder %s249, 7
      %s251 = scalar_select %p250, %s249, 7
      %s252 = smul.addr %s251, 2
      %s253 = smul.addr %s252, 2
      %s254 = scalar_lea.vmem %s1, %s253
      %s255 = ssub.s32 7, %s17
      %p256 = scmp.lt.s32.totalorder %s17, 7
      %s257 = scalar_select %p256, %s17, 7
      %s258 = smul.addr %s257, 2
      %s259 = scalar_lea.vmem %s4, %s258
      %s260 = ssub.s32 7, %s17
      %p261 = scmp.lt.s32.totalorder %s260, 7
      %s262 = scalar_select %p261, %s260, 7
      %s263 = smul.addr %s262, 2
      %s264 = scalar_lea.vmem %s5, %s263
      %s265 = ssub.s32 7, %s17
      %p267 = scmp.eq.s32.totalorder %s17, 0
      // Predicated region
      $region37: #{lstm_classifier_forward.7} parent=35 // pred_check
        %p268 = pneg %p267
      $region38: #{lstm_classifier_forward.7} parent=35 // pred_check_branch
        %270 = sbr.rel (%p268) target = $region40
      $region39: #{lstm_classifier_forward.7} parent=35 // pred_region
        %vm271 = vcmask 254976
        %272 = vst.msk [vmem:[#allocation2] sm:$0x3] %vm271, 0.0
        %273 = vst.msk [vmem:[#allocation3] sm:$0x3] %vm271, 0.0
        %274 = vst.msk [vmem:[#allocation4] sm:$0x3] %vm271, 0.0
        %275 = vst.msk [vmem:[#allocation5] sm:$0x3] %vm271, 0.0
      $region40: #{lstm_classifier_forward.7} parent=35 // pred_fallthru
        _
      %v276 = vld [vmem:[%s248] sm:$0x3]
      %v277 = vld [vmem:[#allocation2] sm:$0x3]
      %v278 = vld [vmem:[#allocation3] sm:$0x3]
      %v279 = vld [vmem:[%s2] sm:$0xf]
      %v280 = vld [vmem:[%s2 + $0x4] sm:$0xf]
      %v281 = vld [vmem:[%s2 + $0x8] sm:$0xf]
      %v282 = vld [vmem:[%s2 + $0xc] sm:$0xf]
      %v283 = vpack.c.bf16 %v277, %v277
      %v288 = vunpack.c.l.b16 %v279
      %v289 = vunpack.c.l.b16 %v280
      %v290 = vunpack.c.l.b16 %v281
      %v291 = vunpack.c.l.b16 %v282
      %v292 = vpack.c.b16 %v289, %v288
      %v293 = vpack.c.b16 %v291, %v290
      %vm296 = vcmask 261120
      %v298 = vsel %vm296, %v283, 0
      %300 = vmatprep.subr.bf16.mxu0 0
      %301 = vmatpush1.bf16.msra.mxu0 %v292
      %302 = vmatprep.subr.bf16.mxu0 0
      %303 = vmatpush1.bf16.msra.mxu0 %v293
      %304 = vmatprep.subr.bf16.mxu0 0
      %305 = vmatpush1.bf16.msra.mxu0 0
      %306 = vmatprep.subr.bf16.mxu0 0
      %307 = vmatpush1.bf16.msra.mxu0 0
      %308 = vmatprep.subr.bf16.mxu0 0
      %309 = vmatpush1.bf16.msra.mxu0 0
      %310 = vmatprep.subr.bf16.mxu0 0
      %311 = vmatpush1.bf16.msra.mxu0 0
      %312 = vmatprep.subr.bf16.mxu0 0
      %313 = vmatpush1.bf16.msra.mxu0 0
      %314 = vmatprep.subr.bf16.mxu0 0
      %315 = vmatpush1.bf16.msra.mxu0 0
      %316 = vmatprep.subr.bf16.mxu0 0
      %317 = vmatpush1.bf16.msra.mxu0 0
      %318 = vmatprep.subr.bf16.mxu0 0
      %319 = vmatpush1.bf16.msra.mxu0 0
      %320 = vmatprep.subr.bf16.mxu0 0
      %321 = vmatpush1.bf16.msra.mxu0 0
      %322 = vmatprep.subr.bf16.mxu0 0
      %323 = vmatpush1.bf16.msra.mxu0 0
      %324 = vmatprep.subr.bf16.mxu0 0
      %325 = vmatpush1.bf16.msra.mxu0 0
      %326 = vmatprep.subr.bf16.mxu0 0
      %327 = vmatpush1.bf16.msra.mxu0 0
      %328 = vmatprep.subr.bf16.mxu0 0
      %329 = vmatpush1.bf16.msra.mxu0 0
      %330 = vmatprep.subr.bf16.mxu0 0
      %331 = vmatpush1.bf16.msra.mxu0 0
      %332 = vmatprep.mubr.bf16.mxu0 0
      %333 = vmatmul.mubr.bf16.gmra.mrb[0].mxu0 %v298
      %v334 = vpop.f32.mrb[0].mxu0
      %v335 = vadd.f32 0.0, %v334
      %v336 = vpop.f32.mrb[0].mxu0
      %v337 = vpop.f32.mrb[0].mxu0
      %v338 = vpop.f32.mrb[0].mxu0
      %339 = vdwg.mxu0
      %v340 = vadd.f32 %v276, %v335
      %v341 = vxor.u32 %v340, 2147483648
      %v342 = vmul.f32 %v341, 1.442695
      %v343 = vpow.pop %v342
      %v344 = vadd.f32 %v343, 1.0
      %v345 = vrcp.pop %v344
      %v346 = vmul.f32 1.0, %v345
      %v347 = vtanh.pop %v340
      %v350 = vunpack.c.l.s4 1983009808
      %v351 = vunpack.c.0.s8 %v350
      %v352 = vlaneseq
      %v353 = vshrl.u32 %v352, 7
      %v354 = vsub.s32 %v351, %v353
      %v355 = vrot.slane %v278, %v354
      %356 = vrot.lane.b32.xlu0 %v355, 32
      %v357 = vpop.permute.xlu0 %356
      %v359 = vmul.f32 %v346, %v357
      %361 = vrot.lane.b32.xlu0 %v347, 64
      %v362 = vpop.permute.xlu0 %361
      %v364 = vmul.f32 %v346, %v362
      %366 = vrot.lane.b32.xlu0 %v364, 32
      %v367 = vpop.permute.xlu0 %366
      %v369 = vadd.f32 %v359, %v367
      %v370 = vtanh.pop %v369
      %372 = vrot.lane.b32.xlu0 %v370, 64
      %v373 = vpop.permute.xlu0 %372
      %v375 = vmul.f32 %v346, %v373
      %v376 = vld [vmem:[%s254 + $0x2] sm:$0x3]
      %v377 = vld [vmem:[#allocation4] sm:$0x3]
      %v378 = vld [vmem:[#allocation5] sm:$0x3]
      %v379 = vld [vmem:[%s3] sm:$0xf]
      %v380 = vld [vmem:[%s3 + $0x4] sm:$0xf]
      %v381 = vld [vmem:[%s3 + $0x8] sm:$0xf]
      %v382 = vld [vmem:[%s3 + $0xc] sm:$0xf]
      %v383 = vpack.c.bf16 %v377, %v377
      %v388 = vunpack.c.l.b16 %v379
      %v389 = vunpack.c.l.b16 %v380
      %v390 = vunpack.c.l.b16 %v381
      %v391 = vunpack.c.l.b16 %v382
      %v392 = vpack.c.b16 %v389, %v388
      %v393 = vpack.c.b16 %v391, %v390
      %v397 = vsel %vm296, %v383, 0
      %399 = vmatprep.subr.bf16.mxu0 0
      %400 = vmatpush1.bf16.msra.mxu0 %v392
      %401 = vmatprep.subr.bf16.mxu0 0
      %402 = vmatpush1.bf16.msra.mxu0 %v393
      %403 = vmatprep.subr.bf16.mxu0 0
      %404 = vmatpush1.bf16.msra.mxu0 0
      %405 = vmatprep.subr.bf16.mxu0 0
      %406 = vmatpush1.bf16.msra.mxu0 0
      %407 = vmatprep.subr.bf16.mxu0 0
      %408 = vmatpush1.bf16.msra.mxu0 0
      %409 = vmatprep.subr.bf16.mxu0 0
      %410 = vmatpush1.bf16.msra.mxu0 0
      %411 = vmatprep.subr.bf16.mxu0 0
      %412 = vmatpush1.bf16.msra.mxu0 0
      %413 = vmatprep.subr.bf16.mxu0 0
      %414 = vmatpush1.bf16.msra.mxu0 0
      %415 = vmatprep.subr.bf16.mxu0 0
      %416 = vmatpush1.bf16.msra.mxu0 0
      %417 = vmatprep.subr.bf16.mxu0 0
      %418 = vmatpush1.bf16.msra.mxu0 0
      %419 = vmatprep.subr.bf16.mxu0 0
      %420 = vmatpush1.bf16.msra.mxu0 0
      %421 = vmatprep.subr.bf16.mxu0 0
      %422 = vmatpush1.bf16.msra.mxu0 0
      %423 = vmatprep.subr.bf16.mxu0 0
      %424 = vmatpush1.bf16.msra.mxu0 0
      %425 = vmatprep.subr.bf16.mxu0 0
      %426 = vmatpush1.bf16.msra.mxu0 0
      %427 = vmatprep.subr.bf16.mxu0 0
      %428 = vmatpush1.bf16.msra.mxu0 0
      %429 = vmatprep.subr.bf16.mxu0 0
      %430 = vmatpush1.bf16.msra.mxu0 0
      %431 = vmatprep.mubr.bf16.mxu0 0
      %432 = vmatmul.mubr.bf16.gmra.mrb[0].mxu0 %v397
      %v433 = vpop.f32.mrb[0].mxu0
      %v434 = vadd.f32 0.0, %v433
      %v435 = vpop.f32.mrb[0].mxu0
      %v436 = vpop.f32.mrb[0].mxu0
      %v437 = vpop.f32.mrb[0].mxu0
      %438 = vdwg.mxu0
      %v439 = vadd.f32 %v376, %v434
      %v440 = vxor.u32 %v439, 2147483648
      %v441 = vmul.f32 %v440, 1.442695
      %v442 = vpow.pop %v441
      %v443 = vadd.f32 %v442, 1.0
      %v444 = vrcp.pop %v443
      %v445 = vmul.f32 1.0, %v444
      %v446 = vtanh.pop %v439
      %v449 = vunpack.c.l.s4 1983009808
      %v450 = vunpack.c.0.s8 %v449
      %v451 = vlaneseq
      %v452 = vshrl.u32 %v451, 7
      %v453 = vsub.s32 %v450, %v452
      %v454 = vrot.slane %v378, %v453
      %455 = vrot.lane.b32.xlu0 %v454, 32
      %v456 = vpop.permute.xlu0 %455
      %v458 = vmul.f32 %v445, %v456
      %460 = vrot.lane.b32.xlu0 %v446, 64
      %v461 = vpop.permute.xlu0 %460
      %v463 = vmul.f32 %v445, %v461
      %465 = vrot.lane.b32.xlu0 %v463, 32
      %v466 = vpop.permute.xlu0 %465
      %v468 = vadd.f32 %v458, %v466
      %v469 = vtanh.pop %v468
      %471 = vrot.lane.b32.xlu0 %v469, 64
      %v472 = vpop.permute.xlu0 %471
      %v474 = vmul.f32 %v445, %v472
      %v477 = vunpack.c.l.s4 1983009808
      %v478 = vunpack.c.0.s8 %v477
      %v479 = vlaneseq
      %v480 = vshrl.u32 %v479, 7
      %v481 = vsub.s32 %v478, %v480
      %v482 = vrot.slane %v375, %v481
      %483 = vrot.lane.b32.xlu0 %v482, 32
      %v484 = vpop.permute.xlu0 %483
      %vm486 = vcmask 254976
      %487 = vst.msk [vmem:[#allocation2] sm:$0x3] %vm486, %v484
      %v490 = vunpack.c.l.s4 1983009808
      %v491 = vunpack.c.0.s8 %v490
      %v492 = vlaneseq
      %v493 = vshrl.u32 %v492, 7
      %v494 = vsub.s32 %v491, %v493
      %v495 = vrot.slane %v369, %v494
      %496 = vrot.lane.b32.xlu0 %v495, 96
      %v497 = vpop.permute.xlu0 %496
      %499 = vst.msk [vmem:[#allocation3] sm:$0x3] %vm486, %v497
      %v502 = vunpack.c.l.s4 1983009808
      %v503 = vunpack.c.0.s8 %v502
      %v504 = vlaneseq
      %v505 = vshrl.u32 %v504, 7
      %v506 = vsub.s32 %v503, %v505
      %v507 = vrot.slane %v474, %v506
      %508 = vrot.lane.b32.xlu0 %v507, 32
      %v509 = vpop.permute.xlu0 %508
      %511 = vst.msk [vmem:[#allocation4] sm:$0x3] %vm486, %v509
      %v514 = vunpack.c.l.s4 1983009808
      %v515 = vunpack.c.0.s8 %v514
      %v516 = vlaneseq
      %v517 = vshrl.u32 %v516, 7
      %v518 = vsub.s32 %v515, %v517
      %v519 = vrot.slane %v468, %v518
      %520 = vrot.lane.b32.xlu0 %v519, 96
      %v521 = vpop.permute.xlu0 %520
      %523 = vst.msk [vmem:[#allocation5] sm:$0x3] %vm486, %v521
      %524 = vst.msk [vmem:[%s259] sm:$0x3] %vm486, %v484
      %525 = vst.msk [vmem:[%s264] sm:$0x3] %vm486, %v509
      %p526 = scmp.lt.s32.totalorder %s17, 7
      %s527 = scalar_select %p526, %s17, 7
      %s528 = smul.addr %s527, 2
      %s529 = scalar_lea.vmem %s4, %s528
      %s530 = ssub.s32 7, %s17
      %p531 = scmp.lt.s32.totalorder %s530, 7
      %s532 = scalar_select %p531, %s530, 7
      %s533 = smul.addr %s532, 2
      %s534 = scalar_lea.vmem %s5, %s533
      // Predicated region
      $region41: #{lstm_classifier_forward.7} parent=35 // pred_check
        %p535 = pneg %p131
      $region42: #{lstm_classifier_forward.7} parent=35 // pred_check_branch
        %537 = sbr.rel (%p535) target = $region44
      $region43: #{lstm_classifier_forward.7} parent=35 // pred_region
        _
      $region44: #{lstm_classifier_forward.7} parent=35 // pred_fallthru
        _
      // Predicated region
      $region45: #{lstm_classifier_forward.7} parent=35 // pred_check
        %p538 = pneg %p159
      $region46: #{lstm_classifier_forward.7} parent=35 // pred_check_branch
        %540 = sbr.rel (%p538) target = $region48
      $region47: #{lstm_classifier_forward.7} parent=35 // pred_region
        %s541 = ssub.s32 7, %s17
      $region48: #{lstm_classifier_forward.7} parent=35 // pred_fallthru
        _
    $region36: #{lstm_classifier_forward.7} parent=5 // pred_fallthru
      _
    %p542 = scmp.le.s32.totalorder 2, %s12
    // Predicated region
    $region49: #{lstm_classifier_forward.7} parent=5 // pred_check
      %p543 = pneg %p542
    $region50: #{lstm_classifier_forward.7} parent=5 // pred_check_branch
      %545 = sbr.rel (%p543) target = $region52
    $region51: #{lstm_classifier_forward.7} parent=5 // pred_region
      %s546 = ssub.s32 %s12, 2
      // Predicated region
      $region53: #{lstm_classifier_forward.7} parent=51 // pred_check
        %p547 = pneg %p137
      $region54: #{lstm_classifier_forward.7} parent=51 // pred_check_branch
        %549 = sbr.rel (%p547) target = $region56
      $region55: #{lstm_classifier_forward.7} parent=51 // pred_region
        %p550 = scmp.lt.s32.totalorder %s18, 7
        %s551 = scalar_select %p550, %s18, 7
        %s552 = smul.addr %s551, 2
        %s553 = scalar_lea.vmem %s4, %s552
      $region56: #{lstm_classifier_forward.7} parent=51 // pred_fallthru
        _
      // Predicated region
      $region57: #{lstm_classifier_forward.7} parent=51 // pred_check
        %p554 = pneg %p165
      $region58: #{lstm_classifier_forward.7} parent=51 // pred_check_branch
        %556 = sbr.rel (%p554) target = $region60
      $region59: #{lstm_classifier_forward.7} parent=51 // pred_region
        %s557 = ssub.s32 7, %s18
        %p558 = scmp.lt.s32.totalorder %s557, 7
        %s559 = scalar_select %p558, %s557, 7
        %s560 = smul.addr %s559, 2
        %s561 = scalar_lea.vmem %s5, %s560
      $region60: #{lstm_classifier_forward.7} parent=51 // pred_fallthru
        _
    $region52: #{lstm_classifier_forward.7} parent=5 // pred_fallthru
      _
  $region6: #{lstm_classifier_forward.7} parent=0 // loop_footer
    %s16 = sadd.s32 1, %s12
  $region7: #{lstm_classifier_forward.7} parent=0 // loop_footer_branch
    %11 = sbr.rel target = $region3
  $region8: #{lstm_classifier_forward.7} parent=0 // loop_exit
    _

// kernel: lstm_classifier_forward.10
$region0: #{lstm_classifier_forward.10}
  #allocation0 [shape = 'u32[]', space=smem, size = 0x4, offset = 0x4, fixed_abs, tag = 'smem constant byte address 0x4 - core index']
  #allocation1 [shape = 'u32[144,128]{1,0:T(1,128)}', space=vmem, size = 0x12000, scoped, tag = 'internal scratch']
  #allocation2 [shape = 'f32[1,1]{1,0:T(1,128)S(1)}', space=vmem, size = 0x200, scoped, tag = 'scoped memory for lstm_classifier_forward.10']
  %s0 = inlined_call_operand.vmem [shape: f32[2,8,64], index: 0, kind: input, shape index: {}]
  %s1 = inlined_call_operand.vmem [shape: f32[1,64], index: 1, kind: input, shape index: {}]
  %s2 = inlined_call_operand.<no memory space> [shape: f32[1,1], index: 2, kind: input, shape index: {}]
  %s3 = inlined_call_operand.vmem [shape: f32[2,1,64], index: 3, kind: output, shape index: {}]
  %s4 = sld [smem:[#allocation0]]
  $region45: #{lstm_classifier_forward.10} parent=0
    _
  %s6 = ssub.s32 1, %s4
  %s7 = scalar_select 0, %s6, %s4
  %v8 = vstv %s2
  %9 = vst [vmem:[#allocation2] sm:$0x1] %v8
  loop: start=0, step=1, limit=4
  $region2: #{lstm_classifier_forward.10} parent=0 // loop_pre_header
    _
  $region3: #{lstm_classifier_forward.10} parent=0 // loop_header
    %s11 = sphi 0, %s15
    %p12 = scmp.ge.s32.totalorder %s11, 4
    %s21 = sphi 0, %s23
    %s24 = sphi 0, %s21
    %s25 = sphi 0, %s24
    %s41 = sphi 0, %s25
    %s45 = sphi 0, %s45
    %s47 = sphi 0, %s45
    %s48 = sphi 0, %s47
    %s62 = sphi 0, %s48
    %s66 = sphi 0, %s66
    %s68 = sphi 0, %s66
    %s69 = sphi 0, %s68
    %s83 = sphi 0, %s69
    %s89 = sphi 0, %s91
    %s92 = sphi 0, %s89
    %s93 = sphi 0, %s92
    %s109 = sphi 0, %s93
  $region4: #{lstm_classifier_forward.10} parent=0 // loop_header_branch
    %14 = sbr.rel (%p12) target = $region8
  $region5: #{lstm_classifier_forward.10} parent=0 // loop_body
    %s16 = ssub.s32 %s11, 1
    %s17 = ssub.s32 %s11, 2
    %s18 = sadd.s32 %s11, 1
    %s19 = ssub.s32 %s11, %s18
    %p20 = scmp.eq.s32.totalorder %s19, 0
    %s22 = sadd.s32 %s21, 1
    %s23 = scalar_select %p20, %s21, %s22
    %p26 = pneg %p20
    %p27 = scmp.eq.s32.totalorder %s11, 1
    %p28 = por %p26, %p27
    %p29 = scmp.ne.s32.totalorder %s21, %s24
    %p30 = scmp.eq.s32.totalorder %s11, 0
    %p31 = por %p29, %p30
    %p32 = scmp.ne.s32.totalorder %s21, %s24
    %p33 = scmp.eq.s32.totalorder %s16, 1
    %p34 = por %p32, %p33
    %p35 = scmp.ne.s32.totalorder %s24, %s25
    %p36 = scmp.eq.s32.totalorder %s16, 0
    %p37 = por %p35, %p36
    %p38 = scmp.ne.s32.totalorder %s24, %s25
    %p39 = scmp.eq.s32.totalorder %s17, 1
    %p40 = por %p38, %p39
    %p42 = scmp.ne.s32.totalorder %s25, %s41
    %p43 = scmp.eq.s32.totalorder %s17, 0
    %p44 = por %p42, %p43
    %s46 = sadd.s32 %s45, 1
    %p49 = scmp.eq.s32.totalorder %s11, 1
    %p50 = scmp.ne.s32.totalorder %s45, %s47
    %p51 = scmp.eq.s32.totalorder %s11, 0
    %p52 = por %p50, %p51
    %p53 = scmp.ne.s32.totalorder %s45, %s47
    %p54 = scmp.eq.s32.totalorder %s16, 1
    %p55 = por %p53, %p54
    %p56 = scmp.ne.s32.totalorder %s47, %s48
    %p57 = scmp.eq.s32.totalorder %s16, 0
    %p58 = por %p56, %p57
    %p59 = scmp.ne.s32.totalorder %s47, %s48
    %p60 = scmp.eq.s32.totalorder %s17, 1
    %p61 = por %p59, %p60
    %p63 = scmp.ne.s32.totalorder %s48, %s62
    %p64 = scmp.eq.s32.totalorder %s17, 0
    %p65 = por %p63, %p64
    %s67 = sadd.s32 %s66, 1
    %p70 = scmp.eq.s32.totalorder %s11, 1
    %p71 = scmp.ne.s32.totalorder %s66, %s68
    %p72 = scmp.eq.s32.totalorder %s11, 0
    %p73 = por %p71, %p72
    %p74 = scmp.ne.s32.totalorder %s66, %s68
    %p75 = scmp.eq.s32.totalorder %s16, 1
    %p76 = por %p74, %p75
    %p77 = scmp.ne.s32.totalorder %s68, %s69
    %p78 = scmp.eq.s32.totalorder %s16, 0
    %p79 = por %p77, %p78
    %p80 = scmp.ne.s32.totalorder %s68, %s69
    %p81 = scmp.eq.s32.totalorder %s17, 1
    %p82 = por %p80, %p81
    %p84 = scmp.ne.s32.totalorder %s69, %s83
    %p85 = scmp.eq.s32.totalorder %s17, 0
    %p86 = por %p84, %p85
    %s87 = ssub.s32 %s11, %s18
    %p88 = scmp.eq.s32.totalorder %s87, 0
    %s90 = sadd.s32 %s89, 1
    %s91 = scalar_select %p88, %s89, %s90
    %p94 = pneg %p88
    %p95 = scmp.eq.s32.totalorder %s11, 1
    %p96 = por %p94, %p95
    %p97 = scmp.ne.s32.totalorder %s89, %s92
    %p98 = scmp.eq.s32.totalorder %s11, 0
    %p99 = por %p97, %p98
    %p100 = scmp.ne.s32.totalorder %s89, %s92
    %p101 = scmp.eq.s32.totalorder %s16, 1
    %p102 = por %p100, %p101
    %p103 = scmp.ne.s32.totalorder %s92, %s93
    %p104 = scmp.eq.s32.totalorder %s16, 0
    %p105 = por %p103, %p104
    %p106 = scmp.ne.s32.totalorder %s92, %s93
    %p107 = scmp.eq.s32.totalorder %s17, 1
    %p108 = por %p106, %p107
    %p110 = scmp.ne.s32.totalorder %s93, %s109
    %p111 = scmp.eq.s32.totalorder %s17, 0
    %p112 = por %p110, %p111
    %p113 = scmp.le.s32.totalorder 1, %s11
    %p114 = scmp.lt.s32.totalorder %s11, 3
    %p115 = pnand %p113, %p114
    %p116 = pneg %p115
    // Predicated region
    $region9: #{lstm_classifier_forward.10} parent=5 // pred_check
      _
    $region10: #{lstm_classifier_forward.10} parent=5 // pred_check_branch
      %118 = sbr.rel (%p115) target = $region12
    $region11: #{lstm_classifier_forward.10} parent=5 // pred_region
      %s119 = ssub.s32 %s11, 1
      // Predicated region
      $region13: #{lstm_classifier_forward.10} parent=11 // pred_check
        %p120 = pneg %p58
      $region14: #{lstm_classifier_forward.10} parent=11 // pred_check_branch
        %122 = sbr.rel (%p120) target = $region16
      $region15: #{lstm_classifier_forward.10} parent=11 // pred_region
        _
      $region16: #{lstm_classifier_forward.10} parent=11 // pred_fallthru
        _
      // Predicated region
      $region17: #{lstm_classifier_forward.10} parent=11 // pred_check
        %p123 = pneg %p79
      $region18: #{lstm_classifier_forward.10} parent=11 // pred_check_branch
        %125 = sbr.rel (%p123) target = $region20
      $region19: #{lstm_classifier_forward.10} parent=11 // pred_region
        _
      $region20: #{lstm_classifier_forward.10} parent=11 // pred_fallthru
        _
    $region12: #{lstm_classifier_forward.10} parent=5 // pred_fallthru
      _
    %p126 = scmp.lt.s32.totalorder %s11, 2
    // Predicated region
    $region21: #{lstm_classifier_forward.10} parent=5 // pred_check
      %p127 = pneg %p126
    $region22: #{lstm_classifier_forward.10} parent=5 // pred_check_branch
      %129 = sbr.rel (%p127) target = $region24
    $region23: #{lstm_classifier_forward.10} parent=5 // pred_region
      // Predicated region
      $region25: #{lstm_classifier_forward.10} parent=23 // pred_check
        %p130 = pneg %p31
      $region26: #{lstm_classifier_forward.10} parent=23 // pred_check_branch
        %132 = sbr.rel (%p130) target = $region28
      $region27: #{lstm_classifier_forward.10} parent=23 // pred_region
        %p133 = scmp.lt.s32.totalorder %s11, 1
        %s134 = scalar_select %p133, %s11, 1
        %s135 = smul.addr %s134, 8
        %s136 = scalar_lea.vmem %s0, %s135
      $region28: #{lstm_classifier_forward.10} parent=23 // pred_fallthru
        _
    $region24: #{lstm_classifier_forward.10} parent=5 // pred_fallthru
      _
    %p137 = scmp.le.s32.totalorder 1, %s11
    %p138 = scmp.lt.s32.totalorder %s11, 3
    %p139 = pnand %p137, %p138
    %p140 = pneg %p139
    // Predicated region
    $region29: #{lstm_classifier_forward.10} parent=5 // pred_check
      _
    $region30: #{lstm_classifier_forward.10} parent=5 // pred_check_branch
      %142 = sbr.rel (%p139) target = $region32
    $region31: #{lstm_classifier_forward.10} parent=5 // pred_region
      %s143 = ssub.s32 %s11, 1
      %p144 = scmp.lt.s32.totalorder %s16, 1
      %s145 = scalar_select %p144, %s16, 1
      %s146 = smul.addr %s145, 8
      %s147 = scalar_lea.vmem %s0, %s146
      %p148 = pneg %p37
      %p149 = pneg %p34
      %p150 = pneg %p58
      %p151 = pneg %p55
      %p152 = pneg %p79
      %p153 = pneg %p76
      %p154 = pneg %p105
      %p155 = pneg %p102
      %p156 = scmp.lt.s32.totalorder %s16, 1
      %s157 = scalar_select %p156, %s16, 1
      %s158 = scalar_lea.vmem %s3, %s157
      %p159 = scmp.lt.s32.totalorder %s16, 1
      %s160 = scalar_select %p159, %s16, 1
      %s161 = smul.addr %s160, 8
      %s162 = scalar_lea.vmem %s0, %s161
      %p163 = scmp.lt.s32.totalorder %s16, 1
      %s164 = scalar_select %p163, %s16, 1
      %s165 = scalar_lea.vmem %s3, %s164
      %v166 = vld [vmem:[%s162] sm:$0xff]
      %v167 = vld [vmem:[%s1] sm:$0x1]
      %v169 = vlaneseq
      %v170 = vshrl.u32 %v169, 7
      %v171 = vsub.s32 0, %v170
      %v172 = vrot.slane %v167, %v171
      %v174 = vmul.f32 %v166, %v172
      %vm175 = vcmask 523264
      %v176 = vsel %vm175, %v174, 0.0
      %177 = vadd.xlane.f32.xlu0 %v176
      %v178 = vpop.xlane.xlu0 %177
      %v179 = vld [vmem:[#allocation2] sm:$0x1]
      %v181 = vlaneseq
      %v182 = vshrl.u32 %v181, 7
      %v183 = vsub.s32 0, %v182
      %v184 = vrot.slane %v179, %v183
      %v186 = vadd.f32 %v178, %v184
      %vm187 = vcmask 7168
      %v188 = vsel %vm187, %v186, -inf
      %v189 = vrot.slane %v188, 4
      %v190 = vmax.f32 %v188, %v189
      %v191 = vrot.slane %v190, 2
      %v192 = vmax.f32 %v190, %v191
      %v193 = vrot.slane %v192, 1
      %v194 = vmax.f32 %v192, %v193
      %v195 = vsub.f32 %v186, %v194
      %v196 = vmul.f32 %v195, 1.442695
      %v197 = vpow.pop %v196
      %v198 = vsel %vm187, %v197, 0.0
      %v199 = vrot.slane %v198, 4
      %v200 = vadd.f32 %v198, %v199
      %v201 = vrot.slane %v200, 2
      %v202 = vadd.f32 %v200, %v201
      %v203 = vrot.slane %v202, 1
      %v204 = vadd.f32 %v202, %v203
      %v205 = vrcp.pop %v204
      %v206 = vmul.f32 %v197, %v205
      %208 = vset.pattern.permute.xlu0 0
      %209 = vperm.xlu0 %208, %v206
      %v210 = vpop.permute.xlu0 %209
      %v212 = vmul.f32 %v166, %v210
      %v213 = vsel %vm175, %v212, 0.0
      %v214 = vrot.slane %v213, 4
      %v215 = vadd.f32 %v213, %v214
      %v216 = vrot.slane %v215, 2
      %v217 = vadd.f32 %v215, %v216
      %v218 = vrot.slane %v217, 1
      %v219 = vadd.f32 %v217, %v218
      %vm220 = vcmask 516096
      %221 = vst.msk [vmem:[%s165] sm:$0x1] %vm220, %v219
      %p222 = scmp.lt.s32.totalorder %s16, 1
      %s223 = scalar_select %p222, %s16, 1
      %s224 = scalar_lea.vmem %s3, %s223
      // Predicated region
      $region33: #{lstm_classifier_forward.10} parent=31 // pred_check
        %p225 = pneg %p102
      $region34: #{lstm_classifier_forward.10} parent=31 // pred_check_branch
        %227 = sbr.rel (%p225) target = $region36
      $region35: #{lstm_classifier_forward.10} parent=31 // pred_region
        _
      $region36: #{lstm_classifier_forward.10} parent=31 // pred_fallthru
        _
    $region32: #{lstm_classifier_forward.10} parent=5 // pred_fallthru
      _
    %p228 = scmp.le.s32.totalorder 2, %s11
    // Predicated region
    $region37: #{lstm_classifier_forward.10} parent=5 // pred_check
      %p229 = pneg %p228
    $region38: #{lstm_classifier_forward.10} parent=5 // pred_check_branch
      %231 = sbr.rel (%p229) target = $region40
    $region39: #{lstm_classifier_forward.10} parent=5 // pred_region
      %s232 = ssub.s32 %s11, 2
      // Predicated region
      $region41: #{lstm_classifier_forward.10} parent=39 // pred_check
        %p233 = pneg %p108
      $region42: #{lstm_classifier_forward.10} parent=39 // pred_check_branch
        %235 = sbr.rel (%p233) target = $region44
      $region43: #{lstm_classifier_forward.10} parent=39 // pred_region
        %p236 = scmp.lt.s32.totalorder %s17, 1
        %s237 = scalar_select %p236, %s17, 1
        %s238 = scalar_lea.vmem %s3, %s237
      $region44: #{lstm_classifier_forward.10} parent=39 // pred_fallthru
        _
    $region40: #{lstm_classifier_forward.10} parent=5 // pred_fallthru
      _
  $region6: #{lstm_classifier_forward.10} parent=0 // loop_footer
    %s15 = sadd.s32 1, %s11
  $region7: #{lstm_classifier_forward.10} parent=0 // loop_footer_branch
    %10 = sbr.rel target = $region3
  $region8: #{lstm_classifier_forward.10} parent=0 // loop_exit
    _

// kernel: lstm_classifier_forward.11
$region0: #{lstm_classifier_forward.11}
  #allocation0 [shape = 'u32[]', space=smem, size = 0x4, offset = 0x4, fixed_abs, tag = 'smem constant byte address 0x4 - core index']
  #allocation1 [shape = 'u32[144,128]{1,0:T(1,128)}', space=vmem, size = 0x12000, scoped, tag = 'internal scratch']
  #allocation2 [shape = 'f32[1,1]{1,0:T(1,128)S(1)}', space=vmem, size = 0x200, scoped, tag = 'scoped memory for lstm_classifier_forward.11']
  %s0 = inlined_call_operand.vmem [shape: f32[8,64], index: 0, kind: input, shape index: {}]
  %s1 = inlined_call_operand.vmem [shape: bf16[64,256], index: 1, kind: input, shape index: {}]
  %s2 = inlined_call_operand.vmem [shape: f32[1,256], index: 2, kind: input, shape index: {}]
  %s3 = inlined_call_operand.vmem [shape: bf16[256,1], index: 3, kind: input, shape index: {}]
  %s4 = inlined_call_operand.<no memory space> [shape: f32[1,1], index: 4, kind: input, shape index: {}]
  %s5 = inlined_call_operand.vmem [shape: f32[8,1], index: 5, kind: output, shape index: {}]
  %s6 = sld [smem:[#allocation0]]
  $region30: #{lstm_classifier_forward.11} parent=0
    _
  %s8 = ssub.s32 1, %s6
  %s9 = scalar_select 0, %s8, %s6
  %v10 = vstv %s4
  %11 = vst [vmem:[#allocation2] sm:$0x1] %v10
  // Predicated region
  $region2: #{lstm_classifier_forward.11} parent=0 // pred_check
    _
  $region3: #{lstm_classifier_forward.11} parent=0 // pred_check_branch
    %13 = sbr.rel (0) target = $region5
  $region4: #{lstm_classifier_forward.11} parent=0 // pred_region
    _
  $region5: #{lstm_classifier_forward.11} parent=0 // pred_fallthru
    _
  // Predicated region
  $region6: #{lstm_classifier_forward.11} parent=0 // pred_check
    _
  $region7: #{lstm_classifier_forward.11} parent=0 // pred_check_branch
    %15 = sbr.rel (0) target = $region9
  $region8: #{lstm_classifier_forward.11} parent=0 // pred_region
    _
  $region9: #{lstm_classifier_forward.11} parent=0 // pred_fallthru
    _
  // Predicated region
  $region10: #{lstm_classifier_forward.11} parent=0 // pred_check
    _
  $region11: #{lstm_classifier_forward.11} parent=0 // pred_check_branch
    %17 = sbr.rel (0) target = $region13
  $region12: #{lstm_classifier_forward.11} parent=0 // pred_region
    _
  $region13: #{lstm_classifier_forward.11} parent=0 // pred_fallthru
    _
  // Predicated region
  $region14: #{lstm_classifier_forward.11} parent=0 // pred_check
    _
  $region15: #{lstm_classifier_forward.11} parent=0 // pred_check_branch
    %19 = sbr.rel (0) target = $region17
  $region16: #{lstm_classifier_forward.11} parent=0 // pred_region
    _
  $region17: #{lstm_classifier_forward.11} parent=0 // pred_fallthru
    _
  // Predicated region
  $region18: #{lstm_classifier_forward.11} parent=0 // pred_check
    _
  $region19: #{lstm_classifier_forward.11} parent=0 // pred_check_branch
    %21 = sbr.rel (0) target = $region21
  $region20: #{lstm_classifier_forward.11} parent=0 // pred_region
    _
  $region21: #{lstm_classifier_forward.11} parent=0 // pred_fallthru
    _
  %v23 = vld [vmem:[%s0] sm:$0xff]
  %v24 = vpack.c.bf16 %v23, %v23
  %v25 = vld [vmem:[%s1] sm:$0xff]
  %v26 = vld [vmem:[%s1 + $0x8] sm:$0xff]
  %v27 = vld [vmem:[%s1 + $0x10] sm:$0xff]
  %v28 = vld [vmem:[%s1 + $0x18] sm:$0xff]
  %v29 = vld [vmem:[%s1 + $0x20] sm:$0xff]
  %v30 = vld [vmem:[%s1 + $0x28] sm:$0xff]
  %v31 = vld [vmem:[%s1 + $0x30] sm:$0xff]
  %v32 = vld [vmem:[%s1 + $0x38] sm:$0xff]
  %v33 = vld [vmem:[%s2] sm:$0x3]
  %v35 = vlaneseq
  %v36 = vshrl.u32 %v35, 7
  %v37 = vsub.s32 0, %v36
  %v38 = vrot.slane %v33, %v37
  %v39 = vlaneseq
  %v40 = vshrl.u32 %v39, 7
  %v41 = vsub.s32 1, %v40
  %v42 = vrot.slane %v33, %v41
  %v53 = vunpack.c.l.b16 %v25
  %v54 = vunpack.c.h.b16 %v25
  %v55 = vunpack.c.l.b16 %v26
  %v56 = vunpack.c.h.b16 %v26
  %v57 = vunpack.c.l.b16 %v27
  %v58 = vunpack.c.h.b16 %v27
  %v59 = vunpack.c.l.b16 %v28
  %v60 = vunpack.c.h.b16 %v28
  %v61 = vunpack.c.l.b16 %v29
  %v62 = vunpack.c.h.b16 %v29
  %v63 = vunpack.c.l.b16 %v30
  %v64 = vunpack.c.h.b16 %v30
  %v65 = vunpack.c.l.b16 %v31
  %v66 = vunpack.c.h.b16 %v31
  %v67 = vunpack.c.l.b16 %v32
  %v68 = vunpack.c.h.b16 %v32
  %v69 = vpack.c.b16 %v55, %v53
  %v70 = vpack.c.b16 %v56, %v54
  %v71 = vpack.c.b16 %v59, %v57
  %v72 = vpack.c.b16 %v60, %v58
  %v73 = vpack.c.b16 %v63, %v61
  %v74 = vpack.c.b16 %v64, %v62
  %v75 = vpack.c.b16 %v67, %v65
  %v76 = vpack.c.b16 %v68, %v66
  %vm85 = vcmask 523264
  %v87 = vsel %vm85, %v24, 0
  %89 = vmatprep.subr.bf16.mxu0 %v70
  %90 = vmatpush1.bf16.msra.mxu0 %v69
  %91 = vmatprep.subr.bf16.mxu0 %v72
  %92 = vmatpush1.bf16.msra.mxu0 %v71
  %93 = vmatprep.subr.bf16.mxu0 %v74
  %94 = vmatpush1.bf16.msra.mxu0 %v73
  %95 = vmatprep.subr.bf16.mxu0 %v76
  %96 = vmatpush1.bf16.msra.mxu0 %v75
  %97 = vmatprep.subr.bf16.mxu0 0
  %98 = vmatpush1.bf16.msra.mxu0 0
  %99 = vmatprep.subr.bf16.mxu0 0
  %100 = vmatpush1.bf16.msra.mxu0 0
  %101 = vmatprep.subr.bf16.mxu0 0
  %102 = vmatpush1.bf16.msra.mxu0 0
  %103 = vmatprep.subr.bf16.mxu0 0
  %104 = vmatpush1.bf16.msra.mxu0 0
  %105 = vmatprep.subr.bf16.mxu0 0
  %106 = vmatpush1.bf16.msra.mxu0 0
  %107 = vmatprep.subr.bf16.mxu0 0
  %108 = vmatpush1.bf16.msra.mxu0 0
  %109 = vmatprep.subr.bf16.mxu0 0
  %110 = vmatpush1.bf16.msra.mxu0 0
  %111 = vmatprep.subr.bf16.mxu0 0
  %112 = vmatpush1.bf16.msra.mxu0 0
  %113 = vmatprep.subr.bf16.mxu0 0
  %114 = vmatpush1.bf16.msra.mxu0 0
  %115 = vmatprep.subr.bf16.mxu0 0
  %116 = vmatpush1.bf16.msra.mxu0 0
  %117 = vmatprep.subr.bf16.mxu0 0
  %118 = vmatpush1.bf16.msra.mxu0 0
  %119 = vmatprep.subr.bf16.mxu0 0
  %120 = vmatpush1.bf16.msra.mxu0 0
  %121 = vmatprep.mubr.bf16.mxu0 0
  %122 = vmatmul.mubr.bf16.gmra.mrb[0].mxu0 %v87
  %v123 = vpop.f32.mrb[0].mxu0
  %v124 = vadd.f32 %v38, %v123
  %v125 = vpop.f32.mrb[0].mxu0
  %v126 = vadd.f32 %v42, %v125
  %v127 = vpop.f32.mrb[0].mxu0
  %v128 = vpop.f32.mrb[0].mxu0
  %129 = vdwg.mxu0
  %v130 = vmax.f32 %v124, 0.0
  %v131 = vmax.f32 %v126, 0.0
  %v132 = vpack.c.bf16 %v130, %v130
  %v133 = vpack.c.bf16 %v131, %v131
  %v134 = vld [vmem:[%s3] sm:$0xf]
  %v135 = vld [vmem:[%s3 + $0x4] sm:$0xf]
  %v136 = vld [vmem:[%s3 + $0x8] sm:$0xf]
  %v137 = vld [vmem:[%s3 + $0xc] sm:$0xf]
  %v138 = vld [vmem:[%s3 + $0x10] sm:$0xf]
  %v139 = vld [vmem:[%s3 + $0x14] sm:$0xf]
  %v140 = vld [vmem:[%s3 + $0x18] sm:$0xf]
  %v141 = vld [vmem:[%s3 + $0x1c] sm:$0xf]
  %v142 = vld [vmem:[%s3 + $0x20] sm:$0xf]
  %v143 = vld [vmem:[%s3 + $0x24] sm:$0xf]
  %v144 = vld [vmem:[%s3 + $0x28] sm:$0xf]
  %v145 = vld [vmem:[%s3 + $0x2c] sm:$0xf]
  %v146 = vld [vmem:[%s3 + $0x30] sm:$0xf]
  %v147 = vld [vmem:[%s3 + $0x34] sm:$0xf]
  %v148 = vld [vmem:[%s3 + $0x38] sm:$0xf]
  %v149 = vld [vmem:[%s3 + $0x3c] sm:$0xf]
  %v150 = vld [vmem:[%s3 + $0x40] sm:$0xf]
  %v151 = vld [vmem:[%s3 + $0x44] sm:$0xf]
  %v152 = vld [vmem:[%s3 + $0x48] sm:$0xf]
  %v153 = vld [vmem:[%s3 + $0x4c] sm:$0xf]
  %v154 = vld [vmem:[%s3 + $0x50] sm:$0xf]
  %v155 = vld [vmem:[%s3 + $0x54] sm:$0xf]
  %v156 = vld [vmem:[%s3 + $0x58] sm:$0xf]
  %v157 = vld [vmem:[%s3 + $0x5c] sm:$0xf]
  %v158 = vld [vmem:[%s3 + $0x60] sm:$0xf]
  %v159 = vld [vmem:[%s3 + $0x64] sm:$0xf]
  %v160 = vld [vmem:[%s3 + $0x68] sm:$0xf]
  %v161 = vld [vmem:[%s3 + $0x6c] sm:$0xf]
  %v162 = vld [vmem:[%s3 + $0x70] sm:$0xf]
  %v163 = vld [vmem:[%s3 + $0x74] sm:$0xf]
  %v164 = vld [vmem:[%s3 + $0x78] sm:$0xf]
  %v165 = vld [vmem:[%s3 + $0x7c] sm:$0xf]
  %v166 = vld [vmem:[#allocation2] sm:$0x1]
  %v168 = vlaneseq
  %v169 = vshrl.u32 %v168, 7
  %v170 = vsub.s32 0, %v169
  %v171 = vrot.slane %v166, %v170
  %v205 = vunpack.c.l.b16 %v134
  %v206 = vunpack.c.l.b16 %v135
  %v207 = vunpack.c.l.b16 %v136
  %v208 = vunpack.c.l.b16 %v137
  %v209 = vunpack.c.l.b16 %v138
  %v210 = vunpack.c.l.b16 %v139
  %v211 = vunpack.c.l.b16 %v140
  %v212 = vunpack.c.l.b16 %v141
  %v213 = vunpack.c.l.b16 %v142
  %v214 = vunpack.c.l.b16 %v143
  %v215 = vunpack.c.l.b16 %v144
  %v216 = vunpack.c.l.b16 %v145
  %v217 = vunpack.c.l.b16 %v146
  %v218 = vunpack.c.l.b16 %v147
  %v219 = vunpack.c.l.b16 %v148
  %v220 = vunpack.c.l.b16 %v149
  %v221 = vunpack.c.l.b16 %v150
  %v222 = vunpack.c.l.b16 %v151
  %v223 = vunpack.c.l.b16 %v152
  %v224 = vunpack.c.l.b16 %v153
  %v225 = vunpack.c.l.b16 %v154
  %v226 = vunpack.c.l.b16 %v155
  %v227 = vunpack.c.l.b16 %v156
  %v228 = vunpack.c.l.b16 %v157
  %v229 = vunpack.c.l.b16 %v158
  %v230 = vunpack.c.l.b16 %v159
  %v231 = vunpack.c.l.b16 %v160
  %v232 = vunpack.c.l.b16 %v161
  %v233 = vunpack.c.l.b16 %v162
  %v234 = vunpack.c.l.b16 %v163
  %v235 = vunpack.c.l.b16 %v164
  %v236 = vunpack.c.l.b16 %v165
  %v237 = vpack.c.b16 %v206, %v205
  %v238 = vpack.c.b16 %v208, %v207
  %v239 = vpack.c.b16 %v210, %v209
  %v240 = vpack.c.b16 %v212, %v211
  %v241 = vpack.c.b16 %v214, %v213
  %v242 = vpack.c.b16 %v216, %v215
  %v243 = vpack.c.b16 %v218, %v217
  %v244 = vpack.c.b16 %v220, %v219
  %v245 = vpack.c.b16 %v222, %v221
  %v246 = vpack.c.b16 %v224, %v223
  %v247 = vpack.c.b16 %v226, %v225
  %v248 = vpack.c.b16 %v228, %v227
  %v249 = vpack.c.b16 %v230, %v229
  %v250 = vpack.c.b16 %v232, %v231
  %v251 = vpack.c.b16 %v234, %v233
  %v252 = vpack.c.b16 %v236, %v235
  %269 = vmatprep.subr.bf16.mxu0 0
  %270 = vmatpush1.bf16.msra.mxu0 %v237
  %271 = vmatprep.subr.bf16.mxu0 0
  %272 = vmatpush1.bf16.msra.mxu0 %v238
  %273 = vmatprep.subr.bf16.mxu0 0
  %274 = vmatpush1.bf16.msra.mxu0 %v239
  %275 = vmatprep.subr.bf16.mxu0 0
  %276 = vmatpush1.bf16.msra.mxu0 %v240
  %277 = vmatprep.subr.bf16.mxu0 0
  %278 = vmatpush1.bf16.msra.mxu0 %v241
  %279 = vmatprep.subr.bf16.mxu0 0
  %280 = vmatpush1.bf16.msra.mxu0 %v242
  %281 = vmatprep.subr.bf16.mxu0 0
  %282 = vmatpush1.bf16.msra.mxu0 %v243
  %283 = vmatprep.subr.bf16.mxu0 0
  %284 = vmatpush1.bf16.msra.mxu0 %v244
  %285 = vmatprep.subr.bf16.mxu0 0
  %286 = vmatpush1.bf16.msra.mxu0 %v245
  %287 = vmatprep.subr.bf16.mxu0 0
  %288 = vmatpush1.bf16.msra.mxu0 %v246
  %289 = vmatprep.subr.bf16.mxu0 0
  %290 = vmatpush1.bf16.msra.mxu0 %v247
  %291 = vmatprep.subr.bf16.mxu0 0
  %292 = vmatpush1.bf16.msra.mxu0 %v248
  %293 = vmatprep.subr.bf16.mxu0 0
  %294 = vmatpush1.bf16.msra.mxu0 %v249
  %295 = vmatprep.subr.bf16.mxu0 0
  %296 = vmatpush1.bf16.msra.mxu0 %v250
  %297 = vmatprep.subr.bf16.mxu0 0
  %298 = vmatpush1.bf16.msra.mxu0 %v251
  %299 = vmatprep.subr.bf16.mxu0 0
  %300 = vmatpush1.bf16.msra.mxu0 %v252
  %301 = vmatprep.mubr.bf16.mxu0 %v133
  %302 = vmatmul.mubr.bf16.gmra.mrb[0].mxu0 %v132
  %v303 = vpop.f32.mrb[0].mxu0
  %v304 = vadd.f32 %v171, %v303
  %v305 = vpop.f32.mrb[0].mxu0
  %v306 = vpop.f32.mrb[0].mxu0
  %v307 = vpop.f32.mrb[0].mxu0
  %308 = vdwg.mxu0
  %vm309 = vcmask 7168
  %310 = vst.msk [vmem:[%s5] sm:$0xff] %vm309, %v304
  // Predicated region
  $region22: #{lstm_classifier_forward.11} parent=0 // pred_check
    _
  $region23: #{lstm_classifier_forward.11} parent=0 // pred_check_branch
    %312 = sbr.rel (0) target = $region25
  $region24: #{lstm_classifier_forward.11} parent=0 // pred_region
    _
  $region25: #{lstm_classifier_forward.11} parent=0 // pred_fallthru
    _
  // Predicated region
  $region26: #{lstm_classifier_forward.11} parent=0 // pred_check
    _
  $region27: #{lstm_classifier_forward.11} parent=0 // pred_check_branch
    %314 = sbr.rel (0) target = $region29
  $region28: #{lstm_classifier_forward.11} parent=0 // pred_region
    _
  $region29: #{lstm_classifier_forward.11} parent=0 // pred_fallthru
    _

</llo_original>
